<compile_context>
chip_gen: v7x
topology: tpu7x:2x2x1
jax: 0.10.0
libtpu: 0.0.40
codegen_flags: <defaults>
</compile_context>

<pallas_src>
import math
from functools import partial

import numpy as np
import jax
import jax.numpy as jnp
from jax import lax
from jax.experimental import pallas as pl
from jax.experimental.pallas import tpu as pltpu


# --------------------------------------------------------------------------------------
# Pallas kernel
# --------------------------------------------------------------------------------------
def sent_att_fishqa_kernel(
    x_ref,       # (S*B, Din)   time-major flattened input
    wih_ref,     # (Din, 12H)   [fwd zero-interleaved gates (6H) | bwd zero-interleaved gates (6H)]
    wh_ref,      # (2H, 18H)    [block-diag whh (6H) | fused attention weights watt (12H)]
    qmat_ref,    # (12H, 6)     block-diagonal score vectors [att_w1 ; q1..q5]
    bias_ref,    # (4, 12H)     rows: bih_both | [bhh_pack, 0] | batt | [sbias, 0]
    out_ref,     # (2B, 2H)     rows 0:B = doc_vector, rows B:2B = [h_fwd_final | h_bwd_final]
    *, S, B, H,
):
    f32 = jnp.float32
    H2, H4, H6 = 2 * H, 4 * H, 6 * H

    bias = bias_ref[...]
    bih = bias[0:1, :]                         # (1, 12H)
    bhh = bias[1:2, :H6]                       # (1, 6H)
    batt = bias[2:3, :]                        # (1, 12H)
    sbias = bias[3:4, :6]                      # (1, 6)

    wh = wh_ref[...]
    whh = wh[:, :H6]                           # (2H, 6H) block-diagonal fwd/bwd hidden weights
    watt = wh[:, H6:]                          # (2H, 12H) fused 6-head attention weights

    # ---- hoisted input-gate projection for BOTH directions in ONE lane-dense matmul ----
    xg_both = jnp.dot(x_ref[...], wih_ref[...], preferred_element_type=f32) + bih   # (S*B, 12H)
    xg_f = xg_both[:, :H6]   # fwd gates live in lanes {0:H, 2H:3H, 4H:5H}, zeros elsewhere
    xg_b = xg_both[:, H6:]   # bwd gates live in lanes {H:2H, 3H:4H, 5H:6H}, zeros elsewhere

    # ---- interleaved fwd/bwd GRU: one fused (B,2H)@(2H,6H) matmul per unrolled step ----
    h = jnp.zeros((B, H2), f32)                # [h_fwd | h_bwd] along lanes
    h_hist = []
    for i in range(S):
        # fwd consumes time i, bwd consumes time S-1-i (independent lanes of the same vregs)
        xg_t = xg_f[i * B:(i + 1) * B, :] + xg_b[(S - 1 - i) * B:(S - i) * B, :]
        hg = jnp.dot(h, whh, preferred_element_type=f32) + bhh      # (B, 6H) gates [r | z | n]
        s = xg_t + hg
        rz = jax.nn.sigmoid(s[:, :H4])
        r = rz[:, :H2]
        z = rz[:, H2:]
        n = jnp.tanh(xg_t[:, H4:] + r * hg[:, H4:])
        h = (1.0 - z) * n + z * h
        h_hist.append(h)

    # ---- assemble f_output (time-major flattened) entirely in registers ----
    fa = jnp.concatenate(h_hist, axis=0)            # row-block t: fwd h(t) in lanes 0:H
    fb = jnp.concatenate(h_hist[::-1], axis=0)      # row-block t: bwd h(t) in lanes H:2H
    lane = lax.broadcasted_iota(jnp.int32, (S * B, H2), 1)
    f2 = jnp.where(lane < H, fa, fb)                # (S*B, 2H)

    # ---- 6-head attention: one projection matmul + one score matmul ----
    hid = jnp.tanh(jnp.dot(f2, watt, preferred_element_type=f32) + batt)        # (S*B, 12H)
    s_all = jnp.dot(hid, qmat_ref[...], preferred_element_type=f32) + sbias     # (S*B, 6)

    # ---- per-(batch, head) softmax over the sequence axis via 0/1 selection matmuls ----
    m = jnp.max(s_all, axis=0, keepdims=True)       # global per-head shift (softmax-invariant)
    e = jnp.exp(s_all - m)                          # (S*B, 6)

    # sel[b, r] = 1 iff flat row r (= s*B + b') belongs to batch b; mod-free construction.
    col = lax.broadcasted_iota(jnp.int32, (B, S * B), 1)
    row = lax.broadcasted_iota(jnp.int32, (B, S * B), 0)
    rowT = lax.broadcasted_iota(jnp.int32, (S * B, B), 0)
    colT = lax.broadcasted_iota(jnp.int32, (S * B, B), 1)
    sel = jnp.zeros((B, S * B), f32)
    selT = jnp.zeros((S * B, B), f32)
    for s_idx in range(S):
        sel = sel + jnp.where(col == row + s_idx * B, 1.0, 0.0)
        selT = selT + jnp.where(rowT == colT + s_idx * B, 1.0, 0.0)

    bsum = jnp.dot(sel, e, preferred_element_type=f32)               # (B, 6) per-batch sums
    denom = jnp.dot(selT, bsum, preferred_element_type=f32)          # (S*B, 6) broadcast back
    alpha = e * pl.reciprocal(denom, approx=True)                    # (S*B, 6)
    alpha_mean = jnp.sum(alpha, axis=1, keepdims=True) * (1.0 / 6.0)  # (S*B, 1)
    doc = jnp.dot(sel, alpha_mean * f2, preferred_element_type=f32)  # (B, 2H)

    # ---- single lane-dense output slab: [doc ; final hidden (fwd|bwd)] ----
    out_ref[...] = jnp.concatenate([doc, h], axis=0)


# --------------------------------------------------------------------------------------
# One-time parameter packing (hoisted out of the per-call path)
# --------------------------------------------------------------------------------------
def pack_params(p, query_emb):
    H = p["whh_f"].shape[-1]
    Din = p["wih_f"].shape[1]
    H2, H6, H12 = 2 * H, 6 * H, 12 * H
    zHH = jnp.zeros((H, H), jnp.float32)

    def interleave(w3, fwd):
        # (3, A, H) -> (A, 6H); gate blocks [r_f r_b | z_f z_b | n_f n_b], only own half filled.
        A = w3.shape[1]
        zero = jnp.zeros((A, H), jnp.float32)
        blocks = []
        for g in range(3):
            blocks += ([w3[g], zero] if fwd else [zero, w3[g]])
        return jnp.concatenate(blocks, axis=1)

    wih = jnp.concatenate([interleave(p["wih_f"], True), interleave(p["wih_b"], False)], axis=1)  # (Din,12H)
    bih = jnp.concatenate([interleave(p["bih_f"], True), interleave(p["bih_b"], False)], axis=1)  # (1,12H)

    # block-diagonal hidden weights (2H, 6H): fwd rows feed fwd lanes, bwd rows feed bwd lanes
    whh = jnp.concatenate(
        [jnp.concatenate(
            [jnp.concatenate([p["whh_f"][g], zHH], axis=1),
             jnp.concatenate([zHH, p["whh_b"][g]], axis=1)], axis=0)
         for g in range(3)], axis=1)
    bhh = jnp.concatenate(
        [jnp.concatenate([p["bhh_f"][g], p["bhh_b"][g]], axis=1) for g in range(3)], axis=1)       # (1,6H)

    watt = jnp.concatenate([p["att_w0"]] + [p["attq_w"][k] for k in range(5)], axis=1)             # (2H,12H)
    batt = jnp.concatenate([p["att_b0"]] + [p["attq_b"][k] for k in range(5)], axis=1)             # (1,12H)

    # score matrix (12H, 6): column 0 = att_w1 in rows 0:2H, column k = query k in rows k*2H:(k+1)*2H
    qvecs = [p["att_w1"][:, 0]] + [query_emb[k] for k in range(5)]
    qmat = jnp.stack(
        [jnp.zeros((H12,), jnp.float32).at[k * H2:(k + 1) * H2].set(qvecs[k]) for k in range(6)],
        axis=1)
    sbias = jnp.concatenate([p["att_b1"], jnp.zeros((1, 5), jnp.float32)], axis=1)                 # (1,6)

    wh_slab = jnp.concatenate([whh, watt], axis=1)                                                 # (2H,18H)
    bias_slab = jnp.concatenate([
        bih,
        jnp.concatenate([bhh, jnp.zeros((1, H6), jnp.float32)], axis=1),
        batt,
        jnp.concatenate([sbias, jnp.zeros((1, H12 - 6), jnp.float32)], axis=1),
    ], axis=0)                                                                                     # (4,12H)

    return {"wih": wih, "wh": wh_slab, "qmat": qmat, "bias": bias_slab}


# --------------------------------------------------------------------------------------
# Forward wrapper (per-call path: transpose + one pallas_call + tiny reshapes)
# --------------------------------------------------------------------------------------
@jax.jit
def sent_att_net_fishqa(x, packed):
    """x: (B, S, 2*word_hidden) f32; packed: output of pack_params."""
    B, S, Din = x.shape
    H2 = packed["wh"].shape[0]
    H = H2 // 2

    # time-major flatten so the hoisted input projection is one tall lane-dense matmul
    x_flat = jnp.transpose(x, (1, 0, 2)).reshape(S * B, Din)

    vmem = pl.BlockSpec(memory_space=pltpu.MemorySpace.VMEM)
    out = pl.pallas_call(
        partial(sent_att_fishqa_kernel, S=S, B=B, H=H),
        out_shape=jax.ShapeDtypeStruct((2 * B, H2), jnp.float32),
        in_specs=[vmem] * 5,
        out_specs=vmem,
    )(x_flat, packed["wih"], packed["wh"], packed["qmat"], packed["bias"])

    doc = out[:B]
    hcat = out[B:]
    h_out = jnp.stack([hcat[:, :H], hcat[:, H:]], axis=0)          # (2, B, H)
    # sum over the sequence axis of a softmax over that same axis is identically 1
    all_q = jnp.ones((B, 5), jnp.float32)
    return doc, h_out, all_q


# --------------------------------------------------------------------------------------
# Deterministic parameter init (synthetic — mirrors nn.GRU / nn.Linear shapes)
# --------------------------------------------------------------------------------------
def init_params(key, word_hidden, sent_hidden):
    Din = 2 * word_hidden
    H = sent_hidden
    H2 = 2 * H
    sg = 1.0 / math.sqrt(H)
    sl = 1.0 / math.sqrt(H2)
    ks = list(jax.random.split(key, 16))

    def u(k, shape, s):
        return jax.random.uniform(k, shape, jnp.float32, -s, s)

    return {
        # GRU, gate order [r, z, n]; weights stored (in_features, H) per gate
        "wih_f": u(ks[0], (3, Din, H), sg), "whh_f": u(ks[1], (3, H, H), sg),
        "bih_f": u(ks[2], (3, 1, H), sg),   "bhh_f": u(ks[3], (3, 1, H), sg),
        "wih_b": u(ks[4], (3, Din, H), sg), "whh_b": u(ks[5], (3, H, H), sg),
        "bih_b": u(ks[6], (3, 1, H), sg),   "bhh_b": u(ks[7], (3, 1, H), sg),
        # att_net : Linear(2H,2H) + Tanh + Linear(2H,1)
        "att_w0": u(ks[8], (H2, H2), sl), "att_b0": u(ks[9], (1, H2), sl),
        "att_w1": u(ks[10], (H2, 1), sl), "att_b1": u(ks[11], (1, 1), sl),
        # att_net_1..5 : Linear(2H,2H) + Tanh, stacked
        "attq_w": u(ks[12], (5, H2, H2), sl), "attq_b": u(ks[13], (5, 1, H2), sl),
    }


# --------------------------------------------------------------------------------------
# Pure-JAX reference (same math as the PyTorch forward) for a sanity check
# --------------------------------------------------------------------------------------
def _ref_gru_dir(xseq, wih, whh, bih, bhh, H):
    B = xseq.shape[1]

    def step(h, x_t):
        i_r = x_t @ wih[0] + bih[0]
        i_z = x_t @ wih[1] + bih[1]
        i_n = x_t @ wih[2] + bih[2]
        h_r = h @ whh[0] + bhh[0]
        h_z = h @ whh[1] + bhh[1]
        h_n = h @ whh[2] + bhh[2]
        r = jax.nn.sigmoid(i_r + h_r)
        z = jax.nn.sigmoid(i_z + h_z)
        n = jnp.tanh(i_n + r * h_n)
        h_new = (1.0 - z) * n + z * h
        return h_new, h_new

    h0 = jnp.zeros((B, H), jnp.float32)
    h_last, hs = lax.scan(step, h0, xseq)
    return hs, h_last


def ref_forward(x, query_emb, p):
    B, S, Din = x.shape
    H = p["whh_f"].shape[-1]
    x_tm = jnp.transpose(x, (1, 0, 2))
    fwd_hs, h_f = _ref_gru_dir(x_tm, p["wih_f"], p["whh_f"], p["bih_f"], p["bhh_f"], H)
    bwd_hs_r, h_b = _ref_gru_dir(x_tm[::-1], p["wih_b"], p["whh_b"], p["bih_b"], p["bhh_b"], H)
    bwd_hs = bwd_hs_r[::-1]
    f = jnp.transpose(jnp.concatenate([fwd_hs, bwd_hs], axis=-1), (1, 0, 2))  # (B, S, 2H)

    hid_t = jnp.tanh(f @ p["att_w0"] + p["att_b0"][0])
    s_t = (hid_t @ p["att_w1"])[..., 0] + p["att_b1"][0, 0]
    alphas = [jax.nn.softmax(s_t, axis=1)]
    qvals = []
    for k in range(5):
        hid = jnp.tanh(f @ p["attq_w"][k] + p["attq_b"][k])
        s = jnp.sum(hid * query_emb[k], axis=2)
        a = jax.nn.softmax(s, axis=1)
        alphas.append(a)
        qvals.append(jnp.sum(a, axis=1, keepdims=True))
    alpha_mean = sum(alphas) / 6.0
    doc = jnp.sum(alpha_mean[:, :, None] * f, axis=1)
    h_out = jnp.stack([h_f, h_b], axis=0)
    all_q = jnp.concatenate(qvals, axis=1)
    return doc, h_out, all_q


# --------------------------------------------------------------------------------------
if __name__ == "__main__":
    B, S = 2, 8
    word_hidden = 16          # input feature dim = 2 * word_hidden = 32
    sent_hidden = 16          # H; f_output feature dim = 2H = 32

    key = jax.random.PRNGKey(0)
    kx, kq, kp = jax.random.split(key, 3)
    x = jax.random.normal(kx, (B, S, 2 * word_hidden), jnp.float32)
    query_emb = jax.random.normal(kq, (5, 2 * sent_hidden), jnp.float32)
    params = init_params(kp, word_hidden, sent_hidden)

    packed = jax.block_until_ready(pack_params(params, query_emb))   # hoisted: once per param set

    doc, h_out, all_q = jax.block_until_ready(sent_att_net_fishqa(x, packed))

    doc_r, h_out_r, all_q_r = jax.block_until_ready(ref_forward(x, query_emb, params))
    np.testing.assert_allclose(np.asarray(doc), np.asarray(doc_r), rtol=1e-2, atol=1e-2)
    np.testing.assert_allclose(np.asarray(h_out), np.asarray(h_out_r), rtol=1e-2, atol=1e-2)
    np.testing.assert_allclose(np.asarray(all_q), np.asarray(all_q_r), rtol=1e-2, atol=1e-2)

    assert doc.shape == (B, 2 * sent_hidden)
    assert h_out.shape == (2, B, sent_hidden)
    assert all_q.shape == (B, 5)
    print("KERNEL_OK")
</pallas_src>

<mosaic_0001>
module attributes {stable_mosaic.version = 11 : i64} {
  func.func @sent_att_fishqa_kernel(%arg0: memref<16x32xf32, #tpu.memory_space<vmem>>, %arg1: memref<32x192xf32, #tpu.memory_space<vmem>>, %arg2: memref<32x288xf32, #tpu.memory_space<vmem>>, %arg3: memref<192x6xf32, #tpu.memory_space<vmem>>, %arg4: memref<4x192xf32, #tpu.memory_space<vmem>>, %arg5: memref<4x32xf32, #tpu.memory_space<vmem>>) attributes {dimension_semantics = [], scalar_prefetch = 0 : i64, scratch_operands = 0 : i64, tpu.core_type = #tpu.core_type<tc>} {
    %c0 = arith.constant 0 : index
    %c0_0 = arith.constant 0 : index
    %0 = vector.load %arg4[%c0, %c0_0] : memref<4x192xf32, #tpu.memory_space<vmem>>, vector<4x192xf32>
    %1 = vector.extract_strided_slice %0 {offsets = [0, 0], sizes = [1, 192], strides = [1, 1]} : vector<4x192xf32> to vector<1x192xf32>
    %2 = vector.extract_strided_slice %0 {offsets = [1, 0], sizes = [1, 96], strides = [1, 1]} : vector<4x192xf32> to vector<1x96xf32>
    %3 = vector.extract_strided_slice %0 {offsets = [2, 0], sizes = [1, 192], strides = [1, 1]} : vector<4x192xf32> to vector<1x192xf32>
    %4 = vector.extract_strided_slice %0 {offsets = [3, 0], sizes = [1, 6], strides = [1, 1]} : vector<4x192xf32> to vector<1x6xf32>
    %c0_1 = arith.constant 0 : index
    %c0_2 = arith.constant 0 : index
    %5 = vector.load %arg2[%c0_1, %c0_2] : memref<32x288xf32, #tpu.memory_space<vmem>>, vector<32x288xf32>
    %6 = vector.extract_strided_slice %5 {offsets = [0, 0], sizes = [32, 96], strides = [1, 1]} : vector<32x288xf32> to vector<32x96xf32>
    %7 = vector.extract_strided_slice %5 {offsets = [0, 96], sizes = [32, 192], strides = [1, 1]} : vector<32x288xf32> to vector<32x192xf32>
    %c0_3 = arith.constant 0 : index
    %c0_4 = arith.constant 0 : index
    %8 = vector.load %arg0[%c0_3, %c0_4] : memref<16x32xf32, #tpu.memory_space<vmem>>, vector<16x32xf32>
    %c0_5 = arith.constant 0 : index
    %c0_6 = arith.constant 0 : index
    %9 = vector.load %arg1[%c0_5, %c0_6] : memref<32x192xf32, #tpu.memory_space<vmem>>, vector<32x192xf32>
    %cst = arith.constant dense<0.000000e+00> : vector<16x192xf32>
    %10 = tpu.matmul %8, %9, %cst {dimension_numbers = #tpu.dot_dimension_numbers<[1], [0], [0], [1], [0, 0, 1, 1], [], []>} : vector<16x32xf32>, vector<32x192xf32>, vector<16x192xf32> -> vector<16x192xf32>
    %11 = vector.broadcast %1 : vector<1x192xf32> to vector<16x192xf32>
    %12 = arith.addf %10, %11 : vector<16x192xf32>
    %13 = vector.extract_strided_slice %12 {offsets = [0, 0], sizes = [16, 96], strides = [1, 1]} : vector<16x192xf32> to vector<16x96xf32>
    %14 = vector.extract_strided_slice %12 {offsets = [0, 96], sizes = [16, 96], strides = [1, 1]} : vector<16x192xf32> to vector<16x96xf32>
    %cst_7 = arith.constant 0.000000e+00 : f32
    %15 = vector.broadcast %cst_7 : f32 to vector<2x32xf32>
    %16 = vector.extract_strided_slice %13 {offsets = [0, 0], sizes = [2, 96], strides = [1, 1]} : vector<16x96xf32> to vector<2x96xf32>
    %17 = vector.extract_strided_slice %14 {offsets = [14, 0], sizes = [2, 96], strides = [1, 1]} : vector<16x96xf32> to vector<2x96xf32>
    %18 = arith.addf %16, %17 : vector<2x96xf32>
    %cst_8 = arith.constant dense<0.000000e+00> : vector<2x96xf32>
    %19 = tpu.matmul %15, %6, %cst_8 {dimension_numbers = #tpu.dot_dimension_numbers<[1], [0], [0], [1], [0, 0, 1, 1], [], []>} : vector<2x32xf32>, vector<32x96xf32>, vector<2x96xf32> -> vector<2x96xf32>
    %20 = vector.broadcast %2 : vector<1x96xf32> to vector<2x96xf32>
    %21 = arith.addf %19, %20 : vector<2x96xf32>
    %22 = arith.addf %18, %21 : vector<2x96xf32>
    %23 = vector.extract_strided_slice %22 {offsets = [0, 0], sizes = [2, 64], strides = [1, 1]} : vector<2x96xf32> to vector<2x64xf32>
    %24 = arith.negf %23 : vector<2x64xf32>
    %25 = math.exp %24 : vector<2x64xf32>
    %cst_9 = arith.constant 1.000000e+00 : f32
    %26 = vector.broadcast %cst_9 : f32 to vector<2x64xf32>
    %27 = arith.addf %26, %25 : vector<2x64xf32>
    %28 = arith.divf %26, %27 : vector<2x64xf32>
    %29 = vector.extract_strided_slice %28 {offsets = [0, 0], sizes = [2, 32], strides = [1, 1]} : vector<2x64xf32> to vector<2x32xf32>
    %30 = vector.extract_strided_slice %28 {offsets = [0, 32], sizes = [2, 32], strides = [1, 1]} : vector<2x64xf32> to vector<2x32xf32>
    %31 = vector.extract_strided_slice %18 {offsets = [0, 64], sizes = [2, 32], strides = [1, 1]} : vector<2x96xf32> to vector<2x32xf32>
    %32 = vector.extract_strided_slice %21 {offsets = [0, 64], sizes = [2, 32], strides = [1, 1]} : vector<2x96xf32> to vector<2x32xf32>
    %33 = arith.mulf %29, %32 : vector<2x32xf32>
    %34 = arith.addf %31, %33 : vector<2x32xf32>
    %35 = math.tanh %34 : vector<2x32xf32>
    %cst_10 = arith.constant 1.000000e+00 : f32
    %36 = vector.broadcast %cst_10 : f32 to vector<2x32xf32>
    %37 = arith.subf %36, %30 : vector<2x32xf32>
    %38 = arith.mulf %37, %35 : vector<2x32xf32>
    %39 = arith.mulf %30, %15 : vector<2x32xf32>
    %40 = arith.addf %38, %39 : vector<2x32xf32>
    %41 = vector.extract_strided_slice %13 {offsets = [2, 0], sizes = [2, 96], strides = [1, 1]} : vector<16x96xf32> to vector<2x96xf32>
    %42 = vector.extract_strided_slice %14 {offsets = [12, 0], sizes = [2, 96], strides = [1, 1]} : vector<16x96xf32> to vector<2x96xf32>
    %43 = arith.addf %41, %42 : vector<2x96xf32>
    %cst_11 = arith.constant dense<0.000000e+00> : vector<2x96xf32>
    %44 = tpu.matmul %40, %6, %cst_11 {dimension_numbers = #tpu.dot_dimension_numbers<[1], [0], [0], [1], [0, 0, 1, 1], [], []>} : vector<2x32xf32>, vector<32x96xf32>, vector<2x96xf32> -> vector<2x96xf32>
    %45 = vector.broadcast %2 : vector<1x96xf32> to vector<2x96xf32>
    %46 = arith.addf %44, %45 : vector<2x96xf32>
    %47 = arith.addf %43, %46 : vector<2x96xf32>
    %48 = vector.extract_strided_slice %47 {offsets = [0, 0], sizes = [2, 64], strides = [1, 1]} : vector<2x96xf32> to vector<2x64xf32>
    %49 = arith.negf %48 : vector<2x64xf32>
    %50 = math.exp %49 : vector<2x64xf32>
    %cst_12 = arith.constant 1.000000e+00 : f32
    %51 = vector.broadcast %cst_12 : f32 to vector<2x64xf32>
    %52 = arith.addf %51, %50 : vector<2x64xf32>
    %53 = arith.divf %51, %52 : vector<2x64xf32>
    %54 = vector.extract_strided_slice %53 {offsets = [0, 0], sizes = [2, 32], strides = [1, 1]} : vector<2x64xf32> to vector<2x32xf32>
    %55 = vector.extract_strided_slice %53 {offsets = [0, 32], sizes = [2, 32], strides = [1, 1]} : vector<2x64xf32> to vector<2x32xf32>
    %56 = vector.extract_strided_slice %43 {offsets = [0, 64], sizes = [2, 32], strides = [1, 1]} : vector<2x96xf32> to vector<2x32xf32>
    %57 = vector.extract_strided_slice %46 {offsets = [0, 64], sizes = [2, 32], strides = [1, 1]} : vector<2x96xf32> to vector<2x32xf32>
    %58 = arith.mulf %54, %57 : vector<2x32xf32>
    %59 = arith.addf %56, %58 : vector<2x32xf32>
    %60 = math.tanh %59 : vector<2x32xf32>
    %cst_13 = arith.constant 1.000000e+00 : f32
    %61 = vector.broadcast %cst_13 : f32 to vector<2x32xf32>
    %62 = arith.subf %61, %55 : vector<2x32xf32>
    %63 = arith.mulf %62, %60 : vector<2x32xf32>
    %64 = arith.mulf %55, %40 : vector<2x32xf32>
    %65 = arith.addf %63, %64 : vector<2x32xf32>
    %66 = vector.extract_strided_slice %13 {offsets = [4, 0], sizes = [2, 96], strides = [1, 1]} : vector<16x96xf32> to vector<2x96xf32>
    %67 = vector.extract_strided_slice %14 {offsets = [10, 0], sizes = [2, 96], strides = [1, 1]} : vector<16x96xf32> to vector<2x96xf32>
    %68 = arith.addf %66, %67 : vector<2x96xf32>
    %cst_14 = arith.constant dense<0.000000e+00> : vector<2x96xf32>
    %69 = tpu.matmul %65, %6, %cst_14 {dimension_numbers = #tpu.dot_dimension_numbers<[1], [0], [0], [1], [0, 0, 1, 1], [], []>} : vector<2x32xf32>, vector<32x96xf32>, vector<2x96xf32> -> vector<2x96xf32>
    %70 = vector.broadcast %2 : vector<1x96xf32> to vector<2x96xf32>
    %71 = arith.addf %69, %70 : vector<2x96xf32>
    %72 = arith.addf %68, %71 : vector<2x96xf32>
    %73 = vector.extract_strided_slice %72 {offsets = [0, 0], sizes = [2, 64], strides = [1, 1]} : vector<2x96xf32> to vector<2x64xf32>
    %74 = arith.negf %73 : vector<2x64xf32>
    %75 = math.exp %74 : vector<2x64xf32>
    %cst_15 = arith.constant 1.000000e+00 : f32
    %76 = vector.broadcast %cst_15 : f32 to vector<2x64xf32>
    %77 = arith.addf %76, %75 : vector<2x64xf32>
    %78 = arith.divf %76, %77 : vector<2x64xf32>
    %79 = vector.extract_strided_slice %78 {offsets = [0, 0], sizes = [2, 32], strides = [1, 1]} : vector<2x64xf32> to vector<2x32xf32>
    %80 = vector.extract_strided_slice %78 {offsets = [0, 32], sizes = [2, 32], strides = [1, 1]} : vector<2x64xf32> to vector<2x32xf32>
    %81 = vector.extract_strided_slice %68 {offsets = [0, 64], sizes = [2, 32], strides = [1, 1]} : vector<2x96xf32> to vector<2x32xf32>
    %82 = vector.extract_strided_slice %71 {offsets = [0, 64], sizes = [2, 32], strides = [1, 1]} : vector<2x96xf32> to vector<2x32xf32>
    %83 = arith.mulf %79, %82 : vector<2x32xf32>
    %84 = arith.addf %81, %83 : vector<2x32xf32>
    %85 = math.tanh %84 : vector<2x32xf32>
    %cst_16 = arith.constant 1.000000e+00 : f32
    %86 = vector.broadcast %cst_16 : f32 to vector<2x32xf32>
    %87 = arith.subf %86, %80 : vector<2x32xf32>
    %88 = arith.mulf %87, %85 : vector<2x32xf32>
    %89 = arith.mulf %80, %65 : vector<2x32xf32>
    %90 = arith.addf %88, %89 : vector<2x32xf32>
    %91 = vector.extract_strided_slice %13 {offsets = [6, 0], sizes = [2, 96], strides = [1, 1]} : vector<16x96xf32> to vector<2x96xf32>
    %92 = vector.extract_strided_slice %14 {offsets = [8, 0], sizes = [2, 96], strides = [1, 1]} : vector<16x96xf32> to vector<2x96xf32>
    %93 = arith.addf %91, %92 : vector<2x96xf32>
    %cst_17 = arith.constant dense<0.000000e+00> : vector<2x96xf32>
    %94 = tpu.matmul %90, %6, %cst_17 {dimension_numbers = #tpu.dot_dimension_numbers<[1], [0], [0], [1], [0, 0, 1, 1], [], []>} : vector<2x32xf32>, vector<32x96xf32>, vector<2x96xf32> -> vector<2x96xf32>
    %95 = vector.broadcast %2 : vector<1x96xf32> to vector<2x96xf32>
    %96 = arith.addf %94, %95 : vector<2x96xf32>
    %97 = arith.addf %93, %96 : vector<2x96xf32>
    %98 = vector.extract_strided_slice %97 {offsets = [0, 0], sizes = [2, 64], strides = [1, 1]} : vector<2x96xf32> to vector<2x64xf32>
    %99 = arith.negf %98 : vector<2x64xf32>
    %100 = math.exp %99 : vector<2x64xf32>
    %cst_18 = arith.constant 1.000000e+00 : f32
    %101 = vector.broadcast %cst_18 : f32 to vector<2x64xf32>
    %102 = arith.addf %101, %100 : vector<2x64xf32>
    %103 = arith.divf %101, %102 : vector<2x64xf32>
    %104 = vector.extract_strided_slice %103 {offsets = [0, 0], sizes = [2, 32], strides = [1, 1]} : vector<2x64xf32> to vector<2x32xf32>
    %105 = vector.extract_strided_slice %103 {offsets = [0, 32], sizes = [2, 32], strides = [1, 1]} : vector<2x64xf32> to vector<2x32xf32>
    %106 = vector.extract_strided_slice %93 {offsets = [0, 64], sizes = [2, 32], strides = [1, 1]} : vector<2x96xf32> to vector<2x32xf32>
    %107 = vector.extract_strided_slice %96 {offsets = [0, 64], sizes = [2, 32], strides = [1, 1]} : vector<2x96xf32> to vector<2x32xf32>
    %108 = arith.mulf %104, %107 : vector<2x32xf32>
    %109 = arith.addf %106, %108 : vector<2x32xf32>
    %110 = math.tanh %109 : vector<2x32xf32>
    %cst_19 = arith.constant 1.000000e+00 : f32
    %111 = vector.broadcast %cst_19 : f32 to vector<2x32xf32>
    %112 = arith.subf %111, %105 : vector<2x32xf32>
    %113 = arith.mulf %112, %110 : vector<2x32xf32>
    %114 = arith.mulf %105, %90 : vector<2x32xf32>
    %115 = arith.addf %113, %114 : vector<2x32xf32>
    %116 = vector.extract_strided_slice %13 {offsets = [8, 0], sizes = [2, 96], strides = [1, 1]} : vector<16x96xf32> to vector<2x96xf32>
    %117 = vector.extract_strided_slice %14 {offsets = [6, 0], sizes = [2, 96], strides = [1, 1]} : vector<16x96xf32> to vector<2x96xf32>
    %118 = arith.addf %116, %117 : vector<2x96xf32>
    %cst_20 = arith.constant dense<0.000000e+00> : vector<2x96xf32>
    %119 = tpu.matmul %115, %6, %cst_20 {dimension_numbers = #tpu.dot_dimension_numbers<[1], [0], [0], [1], [0, 0, 1, 1], [], []>} : vector<2x32xf32>, vector<32x96xf32>, vector<2x96xf32> -> vector<2x96xf32>
    %120 = vector.broadcast %2 : vector<1x96xf32> to vector<2x96xf32>
    %121 = arith.addf %119, %120 : vector<2x96xf32>
    %122 = arith.addf %118, %121 : vector<2x96xf32>
    %123 = vector.extract_strided_slice %122 {offsets = [0, 0], sizes = [2, 64], strides = [1, 1]} : vector<2x96xf32> to vector<2x64xf32>
    %124 = arith.negf %123 : vector<2x64xf32>
    %125 = math.exp %124 : vector<2x64xf32>
    %cst_21 = arith.constant 1.000000e+00 : f32
    %126 = vector.broadcast %cst_21 : f32 to vector<2x64xf32>
    %127 = arith.addf %126, %125 : vector<2x64xf32>
    %128 = arith.divf %126, %127 : vector<2x64xf32>
    %129 = vector.extract_strided_slice %128 {offsets = [0, 0], sizes = [2, 32], strides = [1, 1]} : vector<2x64xf32> to vector<2x32xf32>
    %130 = vector.extract_strided_slice %128 {offsets = [0, 32], sizes = [2, 32], strides = [1, 1]} : vector<2x64xf32> to vector<2x32xf32>
    %131 = vector.extract_strided_slice %118 {offsets = [0, 64], sizes = [2, 32], strides = [1, 1]} : vector<2x96xf32> to vector<2x32xf32>
    %132 = vector.extract_strided_slice %121 {offsets = [0, 64], sizes = [2, 32], strides = [1, 1]} : vector<2x96xf32> to vector<2x32xf32>
    %133 = arith.mulf %129, %132 : vector<2x32xf32>
    %134 = arith.addf %131, %133 : vector<2x32xf32>
    %135 = math.tanh %134 : vector<2x32xf32>
    %cst_22 = arith.constant 1.000000e+00 : f32
    %136 = vector.broadcast %cst_22 : f32 to vector<2x32xf32>
    %137 = arith.subf %136, %130 : vector<2x32xf32>
    %138 = arith.mulf %137, %135 : vector<2x32xf32>
    %139 = arith.mulf %130, %115 : vector<2x32xf32>
    %140 = arith.addf %138, %139 : vector<2x32xf32>
    %141 = vector.extract_strided_slice %13 {offsets = [10, 0], sizes = [2, 96], strides = [1, 1]} : vector<16x96xf32> to vector<2x96xf32>
    %142 = vector.extract_strided_slice %14 {offsets = [4, 0], sizes = [2, 96], strides = [1, 1]} : vector<16x96xf32> to vector<2x96xf32>
    %143 = arith.addf %141, %142 : vector<2x96xf32>
    %cst_23 = arith.constant dense<0.000000e+00> : vector<2x96xf32>
    %144 = tpu.matmul %140, %6, %cst_23 {dimension_numbers = #tpu.dot_dimension_numbers<[1], [0], [0], [1], [0, 0, 1, 1], [], []>} : vector<2x32xf32>, vector<32x96xf32>, vector<2x96xf32> -> vector<2x96xf32>
    %145 = vector.broadcast %2 : vector<1x96xf32> to vector<2x96xf32>
    %146 = arith.addf %144, %145 : vector<2x96xf32>
    %147 = arith.addf %143, %146 : vector<2x96xf32>
    %148 = vector.extract_strided_slice %147 {offsets = [0, 0], sizes = [2, 64], strides = [1, 1]} : vector<2x96xf32> to vector<2x64xf32>
    %149 = arith.negf %148 : vector<2x64xf32>
    %150 = math.exp %149 : vector<2x64xf32>
    %cst_24 = arith.constant 1.000000e+00 : f32
    %151 = vector.broadcast %cst_24 : f32 to vector<2x64xf32>
    %152 = arith.addf %151, %150 : vector<2x64xf32>
    %153 = arith.divf %151, %152 : vector<2x64xf32>
    %154 = vector.extract_strided_slice %153 {offsets = [0, 0], sizes = [2, 32], strides = [1, 1]} : vector<2x64xf32> to vector<2x32xf32>
    %155 = vector.extract_strided_slice %153 {offsets = [0, 32], sizes = [2, 32], strides = [1, 1]} : vector<2x64xf32> to vector<2x32xf32>
    %156 = vector.extract_strided_slice %143 {offsets = [0, 64], sizes = [2, 32], strides = [1, 1]} : vector<2x96xf32> to vector<2x32xf32>
    %157 = vector.extract_strided_slice %146 {offsets = [0, 64], sizes = [2, 32], strides = [1, 1]} : vector<2x96xf32> to vector<2x32xf32>
    %158 = arith.mulf %154, %157 : vector<2x32xf32>
    %159 = arith.addf %156, %158 : vector<2x32xf32>
    %160 = math.tanh %159 : vector<2x32xf32>
    %cst_25 = arith.constant 1.000000e+00 : f32
    %161 = vector.broadcast %cst_25 : f32 to vector<2x32xf32>
    %162 = arith.subf %161, %155 : vector<2x32xf32>
    %163 = arith.mulf %162, %160 : vector<2x32xf32>
    %164 = arith.mulf %155, %140 : vector<2x32xf32>
    %165 = arith.addf %163, %164 : vector<2x32xf32>
    %166 = vector.extract_strided_slice %13 {offsets = [12, 0], sizes = [2, 96], strides = [1, 1]} : vector<16x96xf32> to vector<2x96xf32>
    %167 = vector.extract_strided_slice %14 {offsets = [2, 0], sizes = [2, 96], strides = [1, 1]} : vector<16x96xf32> to vector<2x96xf32>
    %168 = arith.addf %166, %167 : vector<2x96xf32>
    %cst_26 = arith.constant dense<0.000000e+00> : vector<2x96xf32>
    %169 = tpu.matmul %165, %6, %cst_26 {dimension_numbers = #tpu.dot_dimension_numbers<[1], [0], [0], [1], [0, 0, 1, 1], [], []>} : vector<2x32xf32>, vector<32x96xf32>, vector<2x96xf32> -> vector<2x96xf32>
    %170 = vector.broadcast %2 : vector<1x96xf32> to vector<2x96xf32>
    %171 = arith.addf %169, %170 : vector<2x96xf32>
    %172 = arith.addf %168, %171 : vector<2x96xf32>
    %173 = vector.extract_strided_slice %172 {offsets = [0, 0], sizes = [2, 64], strides = [1, 1]} : vector<2x96xf32> to vector<2x64xf32>
    %174 = arith.negf %173 : vector<2x64xf32>
    %175 = math.exp %174 : vector<2x64xf32>
    %cst_27 = arith.constant 1.000000e+00 : f32
    %176 = vector.broadcast %cst_27 : f32 to vector<2x64xf32>
    %177 = arith.addf %176, %175 : vector<2x64xf32>
    %178 = arith.divf %176, %177 : vector<2x64xf32>
    %179 = vector.extract_strided_slice %178 {offsets = [0, 0], sizes = [2, 32], strides = [1, 1]} : vector<2x64xf32> to vector<2x32xf32>
    %180 = vector.extract_strided_slice %178 {offsets = [0, 32], sizes = [2, 32], strides = [1, 1]} : vector<2x64xf32> to vector<2x32xf32>
    %181 = vector.extract_strided_slice %168 {offsets = [0, 64], sizes = [2, 32], strides = [1, 1]} : vector<2x96xf32> to vector<2x32xf32>
    %182 = vector.extract_strided_slice %171 {offsets = [0, 64], sizes = [2, 32], strides = [1, 1]} : vector<2x96xf32> to vector<2x32xf32>
    %183 = arith.mulf %179, %182 : vector<2x32xf32>
    %184 = arith.addf %181, %183 : vector<2x32xf32>
    %185 = math.tanh %184 : vector<2x32xf32>
    %cst_28 = arith.constant 1.000000e+00 : f32
    %186 = vector.broadcast %cst_28 : f32 to vector<2x32xf32>
    %187 = arith.subf %186, %180 : vector<2x32xf32>
    %188 = arith.mulf %187, %185 : vector<2x32xf32>
    %189 = arith.mulf %180, %165 : vector<2x32xf32>
    %190 = arith.addf %188, %189 : vector<2x32xf32>
    %191 = vector.extract_strided_slice %13 {offsets = [14, 0], sizes = [2, 96], strides = [1, 1]} : vector<16x96xf32> to vector<2x96xf32>
    %192 = vector.extract_strided_slice %14 {offsets = [0, 0], sizes = [2, 96], strides = [1, 1]} : vector<16x96xf32> to vector<2x96xf32>
    %193 = arith.addf %191, %192 : vector<2x96xf32>
    %cst_29 = arith.constant dense<0.000000e+00> : vector<2x96xf32>
    %194 = tpu.matmul %190, %6, %cst_29 {dimension_numbers = #tpu.dot_dimension_numbers<[1], [0], [0], [1], [0, 0, 1, 1], [], []>} : vector<2x32xf32>, vector<32x96xf32>, vector<2x96xf32> -> vector<2x96xf32>
    %195 = vector.broadcast %2 : vector<1x96xf32> to vector<2x96xf32>
    %196 = arith.addf %194, %195 : vector<2x96xf32>
    %197 = arith.addf %193, %196 : vector<2x96xf32>
    %198 = vector.extract_strided_slice %197 {offsets = [0, 0], sizes = [2, 64], strides = [1, 1]} : vector<2x96xf32> to vector<2x64xf32>
    %199 = arith.negf %198 : vector<2x64xf32>
    %200 = math.exp %199 : vector<2x64xf32>
    %cst_30 = arith.constant 1.000000e+00 : f32
    %201 = vector.broadcast %cst_30 : f32 to vector<2x64xf32>
    %202 = arith.addf %201, %200 : vector<2x64xf32>
    %203 = arith.divf %201, %202 : vector<2x64xf32>
    %204 = vector.extract_strided_slice %203 {offsets = [0, 0], sizes = [2, 32], strides = [1, 1]} : vector<2x64xf32> to vector<2x32xf32>
    %205 = vector.extract_strided_slice %203 {offsets = [0, 32], sizes = [2, 32], strides = [1, 1]} : vector<2x64xf32> to vector<2x32xf32>
    %206 = vector.extract_strided_slice %193 {offsets = [0, 64], sizes = [2, 32], strides = [1, 1]} : vector<2x96xf32> to vector<2x32xf32>
    %207 = vector.extract_strided_slice %196 {offsets = [0, 64], sizes = [2, 32], strides = [1, 1]} : vector<2x96xf32> to vector<2x32xf32>
    %208 = arith.mulf %204, %207 : vector<2x32xf32>
    %209 = arith.addf %206, %208 : vector<2x32xf32>
    %210 = math.tanh %209 : vector<2x32xf32>
    %cst_31 = arith.constant 1.000000e+00 : f32
    %211 = vector.broadcast %cst_31 : f32 to vector<2x32xf32>
    %212 = arith.subf %211, %205 : vector<2x32xf32>
    %213 = arith.mulf %212, %210 : vector<2x32xf32>
    %214 = arith.mulf %205, %190 : vector<2x32xf32>
    %215 = arith.addf %213, %214 : vector<2x32xf32>
    %216 = tpu.concatenate %40, %65, %90, %115, %140, %165, %190, %215 in 0 : vector<2x32xf32>, vector<2x32xf32>, vector<2x32xf32>, vector<2x32xf32>, vector<2x32xf32>, vector<2x32xf32>, vector<2x32xf32>, vector<2x32xf32> -> vector<16x32xf32>
    %217 = tpu.concatenate %215, %190, %165, %140, %115, %90, %65, %40 in 0 : vector<2x32xf32>, vector<2x32xf32>, vector<2x32xf32>, vector<2x32xf32>, vector<2x32xf32>, vector<2x32xf32>, vector<2x32xf32>, vector<2x32xf32> -> vector<16x32xf32>
    %218 = tpu.iota {dimensions = array<i32: 1>} : vector<16x32xi32>
    %c16_i32 = arith.constant 16 : i32
    %219 = vector.broadcast %c16_i32 : i32 to vector<16x32xi32>
    %220 = arith.cmpi slt, %218, %219 : vector<16x32xi32>
    %221 = arith.select %220, %216, %217 : vector<16x32xi1>, vector<16x32xf32>
    %cst_32 = arith.constant dense<0.000000e+00> : vector<16x192xf32>
    %222 = tpu.matmul %221, %7, %cst_32 {dimension_numbers = #tpu.dot_dimension_numbers<[1], [0], [0], [1], [0, 0, 1, 1], [], []>} : vector<16x32xf32>, vector<32x192xf32>, vector<16x192xf32> -> vector<16x192xf32>
    %223 = vector.broadcast %3 : vector<1x192xf32> to vector<16x192xf32>
    %224 = arith.addf %222, %223 : vector<16x192xf32>
    %225 = math.tanh %224 : vector<16x192xf32>
    %c0_33 = arith.constant 0 : index
    %c0_34 = arith.constant 0 : index
    %226 = vector.load %arg3[%c0_33, %c0_34] : memref<192x6xf32, #tpu.memory_space<vmem>>, vector<192x6xf32>
    %cst_35 = arith.constant dense<0.000000e+00> : vector<16x6xf32>
    %227 = tpu.matmul %225, %226, %cst_35 {dimension_numbers = #tpu.dot_dimension_numbers<[1], [0], [0], [1], [0, 0, 1, 1], [], []>} : vector<16x192xf32>, vector<192x6xf32>, vector<16x6xf32> -> vector<16x6xf32>
    %228 = vector.broadcast %4 : vector<1x6xf32> to vector<16x6xf32>
    %229 = arith.addf %227, %228 : vector<16x6xf32>
    %cst_36 = arith.constant dense<0xFF800000> : vector<6xf32>
    %230 = vector.multi_reduction <maximumf>, %229, %cst_36 [0] : vector<16x6xf32> to vector<6xf32>
    %231 = vector.shape_cast %230 : vector<6xf32> to vector<1x6xf32>
    %232 = vector.broadcast %231 : vector<1x6xf32> to vector<16x6xf32>
    %233 = arith.subf %229, %232 : vector<16x6xf32>
    %234 = math.exp %233 : vector<16x6xf32>
    %235 = tpu.iota {dimensions = array<i32: 1>} : vector<2x16xi32>
    %236 = tpu.iota {dimensions = array<i32: 0>} : vector<2x16xi32>
    %237 = tpu.iota {dimensions = array<i32: 0>} : vector<16x2xi32>
    %238 = tpu.iota {dimensions = array<i32: 1>} : vector<16x2xi32>
    %cst_37 = arith.constant 0.000000e+00 : f32
    %239 = vector.broadcast %cst_37 : f32 to vector<2x16xf32>
    %cst_38 = arith.constant 0.000000e+00 : f32
    %240 = vector.broadcast %cst_38 : f32 to vector<16x2xf32>
    %c0_i32 = arith.constant 0 : i32
    %241 = vector.broadcast %c0_i32 : i32 to vector<2x16xi32>
    %242 = arith.addi %236, %241 : vector<2x16xi32>
    %243 = arith.cmpi eq, %235, %242 : vector<2x16xi32>
    %cst_39 = arith.constant 1.000000e+00 : f32
    %cst_40 = arith.constant 0.000000e+00 : f32
    %244 = vector.broadcast %cst_39 : f32 to vector<2x16xf32>
    %245 = vector.broadcast %cst_40 : f32 to vector<2x16xf32>
    %246 = arith.select %243, %244, %245 : vector<2x16xi1>, vector<2x16xf32>
    %247 = arith.addf %239, %246 : vector<2x16xf32>
    %c0_i32_41 = arith.constant 0 : i32
    %248 = vector.broadcast %c0_i32_41 : i32 to vector<16x2xi32>
    %249 = arith.addi %238, %248 : vector<16x2xi32>
    %250 = arith.cmpi eq, %237, %249 : vector<16x2xi32>
    %cst_42 = arith.constant 1.000000e+00 : f32
    %cst_43 = arith.constant 0.000000e+00 : f32
    %251 = vector.broadcast %cst_42 : f32 to vector<16x2xf32>
    %252 = vector.broadcast %cst_43 : f32 to vector<16x2xf32>
    %253 = arith.select %250, %251, %252 : vector<16x2xi1>, vector<16x2xf32>
    %254 = arith.addf %240, %253 : vector<16x2xf32>
    %c2_i32 = arith.constant 2 : i32
    %255 = vector.broadcast %c2_i32 : i32 to vector<2x16xi32>
    %256 = arith.addi %236, %255 : vector<2x16xi32>
    %257 = arith.cmpi eq, %235, %256 : vector<2x16xi32>
    %cst_44 = arith.constant 1.000000e+00 : f32
    %cst_45 = arith.constant 0.000000e+00 : f32
    %258 = vector.broadcast %cst_44 : f32 to vector<2x16xf32>
    %259 = vector.broadcast %cst_45 : f32 to vector<2x16xf32>
    %260 = arith.select %257, %258, %259 : vector<2x16xi1>, vector<2x16xf32>
    %261 = arith.addf %247, %260 : vector<2x16xf32>
    %c2_i32_46 = arith.constant 2 : i32
    %262 = vector.broadcast %c2_i32_46 : i32 to vector<16x2xi32>
    %263 = arith.addi %238, %262 : vector<16x2xi32>
    %264 = arith.cmpi eq, %237, %263 : vector<16x2xi32>
    %cst_47 = arith.constant 1.000000e+00 : f32
    %cst_48 = arith.constant 0.000000e+00 : f32
    %265 = vector.broadcast %cst_47 : f32 to vector<16x2xf32>
    %266 = vector.broadcast %cst_48 : f32 to vector<16x2xf32>
    %267 = arith.select %264, %265, %266 : vector<16x2xi1>, vector<16x2xf32>
    %268 = arith.addf %254, %267 : vector<16x2xf32>
    %c4_i32 = arith.constant 4 : i32
    %269 = vector.broadcast %c4_i32 : i32 to vector<2x16xi32>
    %270 = arith.addi %236, %269 : vector<2x16xi32>
    %271 = arith.cmpi eq, %235, %270 : vector<2x16xi32>
    %cst_49 = arith.constant 1.000000e+00 : f32
    %cst_50 = arith.constant 0.000000e+00 : f32
    %272 = vector.broadcast %cst_49 : f32 to vector<2x16xf32>
    %273 = vector.broadcast %cst_50 : f32 to vector<2x16xf32>
    %274 = arith.select %271, %272, %273 : vector<2x16xi1>, vector<2x16xf32>
    %275 = arith.addf %261, %274 : vector<2x16xf32>
    %c4_i32_51 = arith.constant 4 : i32
    %276 = vector.broadcast %c4_i32_51 : i32 to vector<16x2xi32>
    %277 = arith.addi %238, %276 : vector<16x2xi32>
    %278 = arith.cmpi eq, %237, %277 : vector<16x2xi32>
    %cst_52 = arith.constant 1.000000e+00 : f32
    %cst_53 = arith.constant 0.000000e+00 : f32
    %279 = vector.broadcast %cst_52 : f32 to vector<16x2xf32>
    %280 = vector.broadcast %cst_53 : f32 to vector<16x2xf32>
    %281 = arith.select %278, %279, %280 : vector<16x2xi1>, vector<16x2xf32>
    %282 = arith.addf %268, %281 : vector<16x2xf32>
    %c6_i32 = arith.constant 6 : i32
    %283 = vector.broadcast %c6_i32 : i32 to vector<2x16xi32>
    %284 = arith.addi %236, %283 : vector<2x16xi32>
    %285 = arith.cmpi eq, %235, %284 : vector<2x16xi32>
    %cst_54 = arith.constant 1.000000e+00 : f32
    %cst_55 = arith.constant 0.000000e+00 : f32
    %286 = vector.broadcast %cst_54 : f32 to vector<2x16xf32>
    %287 = vector.broadcast %cst_55 : f32 to vector<2x16xf32>
    %288 = arith.select %285, %286, %287 : vector<2x16xi1>, vector<2x16xf32>
    %289 = arith.addf %275, %288 : vector<2x16xf32>
    %c6_i32_56 = arith.constant 6 : i32
    %290 = vector.broadcast %c6_i32_56 : i32 to vector<16x2xi32>
    %291 = arith.addi %238, %290 : vector<16x2xi32>
    %292 = arith.cmpi eq, %237, %291 : vector<16x2xi32>
    %cst_57 = arith.constant 1.000000e+00 : f32
    %cst_58 = arith.constant 0.000000e+00 : f32
    %293 = vector.broadcast %cst_57 : f32 to vector<16x2xf32>
    %294 = vector.broadcast %cst_58 : f32 to vector<16x2xf32>
    %295 = arith.select %292, %293, %294 : vector<16x2xi1>, vector<16x2xf32>
    %296 = arith.addf %282, %295 : vector<16x2xf32>
    %c8_i32 = arith.constant 8 : i32
    %297 = vector.broadcast %c8_i32 : i32 to vector<2x16xi32>
    %298 = arith.addi %236, %297 : vector<2x16xi32>
    %299 = arith.cmpi eq, %235, %298 : vector<2x16xi32>
    %cst_59 = arith.constant 1.000000e+00 : f32
    %cst_60 = arith.constant 0.000000e+00 : f32
    %300 = vector.broadcast %cst_59 : f32 to vector<2x16xf32>
    %301 = vector.broadcast %cst_60 : f32 to vector<2x16xf32>
    %302 = arith.select %299, %300, %301 : vector<2x16xi1>, vector<2x16xf32>
    %303 = arith.addf %289, %302 : vector<2x16xf32>
    %c8_i32_61 = arith.constant 8 : i32
    %304 = vector.broadcast %c8_i32_61 : i32 to vector<16x2xi32>
    %305 = arith.addi %238, %304 : vector<16x2xi32>
    %306 = arith.cmpi eq, %237, %305 : vector<16x2xi32>
    %cst_62 = arith.constant 1.000000e+00 : f32
    %cst_63 = arith.constant 0.000000e+00 : f32
    %307 = vector.broadcast %cst_62 : f32 to vector<16x2xf32>
    %308 = vector.broadcast %cst_63 : f32 to vector<16x2xf32>
    %309 = arith.select %306, %307, %308 : vector<16x2xi1>, vector<16x2xf32>
    %310 = arith.addf %296, %309 : vector<16x2xf32>
    %c10_i32 = arith.constant 10 : i32
    %311 = vector.broadcast %c10_i32 : i32 to vector<2x16xi32>
    %312 = arith.addi %236, %311 : vector<2x16xi32>
    %313 = arith.cmpi eq, %235, %312 : vector<2x16xi32>
    %cst_64 = arith.constant 1.000000e+00 : f32
    %cst_65 = arith.constant 0.000000e+00 : f32
    %314 = vector.broadcast %cst_64 : f32 to vector<2x16xf32>
    %315 = vector.broadcast %cst_65 : f32 to vector<2x16xf32>
    %316 = arith.select %313, %314, %315 : vector<2x16xi1>, vector<2x16xf32>
    %317 = arith.addf %303, %316 : vector<2x16xf32>
    %c10_i32_66 = arith.constant 10 : i32
    %318 = vector.broadcast %c10_i32_66 : i32 to vector<16x2xi32>
    %319 = arith.addi %238, %318 : vector<16x2xi32>
    %320 = arith.cmpi eq, %237, %319 : vector<16x2xi32>
    %cst_67 = arith.constant 1.000000e+00 : f32
    %cst_68 = arith.constant 0.000000e+00 : f32
    %321 = vector.broadcast %cst_67 : f32 to vector<16x2xf32>
    %322 = vector.broadcast %cst_68 : f32 to vector<16x2xf32>
    %323 = arith.select %320, %321, %322 : vector<16x2xi1>, vector<16x2xf32>
    %324 = arith.addf %310, %323 : vector<16x2xf32>
    %c12_i32 = arith.constant 12 : i32
    %325 = vector.broadcast %c12_i32 : i32 to vector<2x16xi32>
    %326 = arith.addi %236, %325 : vector<2x16xi32>
    %327 = arith.cmpi eq, %235, %326 : vector<2x16xi32>
    %cst_69 = arith.constant 1.000000e+00 : f32
    %cst_70 = arith.constant 0.000000e+00 : f32
    %328 = vector.broadcast %cst_69 : f32 to vector<2x16xf32>
    %329 = vector.broadcast %cst_70 : f32 to vector<2x16xf32>
    %330 = arith.select %327, %328, %329 : vector<2x16xi1>, vector<2x16xf32>
    %331 = arith.addf %317, %330 : vector<2x16xf32>
    %c12_i32_71 = arith.constant 12 : i32
    %332 = vector.broadcast %c12_i32_71 : i32 to vector<16x2xi32>
    %333 = arith.addi %238, %332 : vector<16x2xi32>
    %334 = arith.cmpi eq, %237, %333 : vector<16x2xi32>
    %cst_72 = arith.constant 1.000000e+00 : f32
    %cst_73 = arith.constant 0.000000e+00 : f32
    %335 = vector.broadcast %cst_72 : f32 to vector<16x2xf32>
    %336 = vector.broadcast %cst_73 : f32 to vector<16x2xf32>
    %337 = arith.select %334, %335, %336 : vector<16x2xi1>, vector<16x2xf32>
    %338 = arith.addf %324, %337 : vector<16x2xf32>
    %c14_i32 = arith.constant 14 : i32
    %339 = vector.broadcast %c14_i32 : i32 to vector<2x16xi32>
    %340 = arith.addi %236, %339 : vector<2x16xi32>
    %341 = arith.cmpi eq, %235, %340 : vector<2x16xi32>
    %cst_74 = arith.constant 1.000000e+00 : f32
    %cst_75 = arith.constant 0.000000e+00 : f32
    %342 = vector.broadcast %cst_74 : f32 to vector<2x16xf32>
    %343 = vector.broadcast %cst_75 : f32 to vector<2x16xf32>
    %344 = arith.select %341, %342, %343 : vector<2x16xi1>, vector<2x16xf32>
    %345 = arith.addf %331, %344 : vector<2x16xf32>
    %c14_i32_76 = arith.constant 14 : i32
    %346 = vector.broadcast %c14_i32_76 : i32 to vector<16x2xi32>
    %347 = arith.addi %238, %346 : vector<16x2xi32>
    %348 = arith.cmpi eq, %237, %347 : vector<16x2xi32>
    %cst_77 = arith.constant 1.000000e+00 : f32
    %cst_78 = arith.constant 0.000000e+00 : f32
    %349 = vector.broadcast %cst_77 : f32 to vector<16x2xf32>
    %350 = vector.broadcast %cst_78 : f32 to vector<16x2xf32>
    %351 = arith.select %348, %349, %350 : vector<16x2xi1>, vector<16x2xf32>
    %352 = arith.addf %338, %351 : vector<16x2xf32>
    %cst_79 = arith.constant dense<0.000000e+00> : vector<2x6xf32>
    %353 = tpu.matmul %345, %234, %cst_79 {dimension_numbers = #tpu.dot_dimension_numbers<[1], [0], [0], [1], [0, 0, 1, 1], [], []>} : vector<2x16xf32>, vector<16x6xf32>, vector<2x6xf32> -> vector<2x6xf32>
    %cst_80 = arith.constant dense<0.000000e+00> : vector<16x6xf32>
    %354 = tpu.matmul %352, %353, %cst_80 {dimension_numbers = #tpu.dot_dimension_numbers<[1], [0], [0], [1], [0, 0, 1, 1], [], []>} : vector<16x2xf32>, vector<2x6xf32>, vector<16x6xf32> -> vector<16x6xf32>
    %355 = tpu.reciprocal %354 {approx = true} : vector<16x6xf32> -> vector<16x6xf32>
    %356 = arith.mulf %234, %355 : vector<16x6xf32>
    %cst_81 = arith.constant dense<0.000000e+00> : vector<16xf32>
    %357 = vector.multi_reduction <add>, %356, %cst_81 [1] : vector<16x6xf32> to vector<16xf32>
    %358 = vector.shape_cast %357 : vector<16xf32> to vector<16x1xf32>
    %cst_82 = arith.constant 0.166666672 : f32
    %359 = vector.broadcast %cst_82 : f32 to vector<16x1xf32>
    %360 = arith.mulf %358, %359 : vector<16x1xf32>
    %361 = vector.broadcast %360 : vector<16x1xf32> to vector<16x32xf32>
    %362 = arith.mulf %361, %221 : vector<16x32xf32>
    %cst_83 = arith.constant dense<0.000000e+00> : vector<2x32xf32>
    %363 = tpu.matmul %345, %362, %cst_83 {dimension_numbers = #tpu.dot_dimension_numbers<[1], [0], [0], [1], [0, 0, 1, 1], [], []>} : vector<2x16xf32>, vector<16x32xf32>, vector<2x32xf32> -> vector<2x32xf32>
    %364 = tpu.concatenate %363, %215 in 0 : vector<2x32xf32>, vector<2x32xf32> -> vector<4x32xf32>
    %c0_84 = arith.constant 0 : index
    %c0_85 = arith.constant 0 : index
    %365 = vector.load %arg5[%c0_84, %c0_85] : memref<4x32xf32, #tpu.memory_space<vmem>>, vector<4x32xf32>
    tpu.vector_store %arg5[%c0_84, %c0_85], %364 {strides = array<i32>} : memref<4x32xf32, #tpu.memory_space<vmem>>, vector<4x32xf32>,
    return
  }
}

</mosaic_0001>

<llo_original>
// kernel: sent_att_net_fishqa.1
$region0: #{sent_att_net_fishqa.1}
  #allocation0 [shape = 'u32[]', space=smem, size = 0x4, offset = 0x4, fixed_abs, tag = 'smem constant byte address 0x4 - core index']
  #allocation1 [shape = 'u32[144,128]{1,0:T(1,128)}', space=vmem, size = 0x12000, scoped, tag = 'internal scratch']
  %s0 = inlined_call_operand.vmem [shape: f32[16,32], index: 0, kind: input, shape index: {}]
  %s1 = inlined_call_operand.vmem [shape: f32[32,192], index: 1, kind: input, shape index: {}]
  %s2 = inlined_call_operand.vmem [shape: f32[32,288], index: 2, kind: input, shape index: {}]
  %s3 = inlined_call_operand.vmem [shape: f32[192,6], index: 3, kind: input, shape index: {}]
  %s4 = inlined_call_operand.vmem [shape: f32[4,192], index: 4, kind: input, shape index: {}]
  %s5 = inlined_call_operand.vmem [shape: f32[4,32], index: 5, kind: output, shape index: {}]
  %s6 = sld [smem:[#allocation0]]
  $region30: #{sent_att_net_fishqa.1} parent=0
    _
  %s8 = ssub.s32 1, %s6
  %s9 = scalar_select 0, %s8, %s6
  // Predicated region
  $region2: #{sent_att_net_fishqa.1} parent=0 // pred_check
    _
  $region3: #{sent_att_net_fishqa.1} parent=0 // pred_check_branch
    %11 = sbr.rel (0) target = $region5
  $region4: #{sent_att_net_fishqa.1} parent=0 // pred_region
    _
  $region5: #{sent_att_net_fishqa.1} parent=0 // pred_fallthru
    _
  // Predicated region
  $region6: #{sent_att_net_fishqa.1} parent=0 // pred_check
    _
  $region7: #{sent_att_net_fishqa.1} parent=0 // pred_check_branch
    %13 = sbr.rel (0) target = $region9
  $region8: #{sent_att_net_fishqa.1} parent=0 // pred_region
    _
  $region9: #{sent_att_net_fishqa.1} parent=0 // pred_fallthru
    _
  // Predicated region
  $region10: #{sent_att_net_fishqa.1} parent=0 // pred_check
    _
  $region11: #{sent_att_net_fishqa.1} parent=0 // pred_check_branch
    %15 = sbr.rel (0) target = $region13
  $region12: #{sent_att_net_fishqa.1} parent=0 // pred_region
    _
  $region13: #{sent_att_net_fishqa.1} parent=0 // pred_fallthru
    _
  // Predicated region
  $region14: #{sent_att_net_fishqa.1} parent=0 // pred_check
    _
  $region15: #{sent_att_net_fishqa.1} parent=0 // pred_check_branch
    %17 = sbr.rel (0) target = $region17
  $region16: #{sent_att_net_fishqa.1} parent=0 // pred_region
    _
  $region17: #{sent_att_net_fishqa.1} parent=0 // pred_fallthru
    _
  // Predicated region
  $region18: #{sent_att_net_fishqa.1} parent=0 // pred_check
    _
  $region19: #{sent_att_net_fishqa.1} parent=0 // pred_check_branch
    %19 = sbr.rel (0) target = $region21
  $region20: #{sent_att_net_fishqa.1} parent=0 // pred_region
    _
  $region21: #{sent_att_net_fishqa.1} parent=0 // pred_fallthru
    _
  %v20 = vld [vmem:[%s4] sm:$0xff]
  %v21 = vld [vmem:[%s2] sm:$0xff]
  %v22 = vld [vmem:[%s2 + $0x8] sm:$0xff]
  %v23 = vld [vmem:[%s2 + $0x10] sm:$0xff]
  %v24 = vld [vmem:[%s2 + $0x18] sm:$0xff]
  %v25 = vld [vmem:[%s2 + $0x20] sm:$0xff]
  %v26 = vld [vmem:[%s2 + $0x28] sm:$0xff]
  %v27 = vld [vmem:[%s2 + $0x30] sm:$0xff]
  %v28 = vld [vmem:[%s2 + $0x38] sm:$0xff]
  %v29 = vld [vmem:[%s2 + $0x40] sm:$0xff]
  %v30 = vld [vmem:[%s2 + $0x48] sm:$0xff]
  %v31 = vld [vmem:[%s2 + $0x50] sm:$0xff]
  %v32 = vld [vmem:[%s2 + $0x58] sm:$0xff]
  %v33 = vld [vmem:[%s0] sm:$0xff]
  %v34 = vld [vmem:[%s0 + $0x8] sm:$0xff]
  %v35 = vld [vmem:[%s1] sm:$0xff]
  %v36 = vld [vmem:[%s1 + $0x8] sm:$0xff]
  %v37 = vld [vmem:[%s1 + $0x10] sm:$0xff]
  %v38 = vld [vmem:[%s1 + $0x18] sm:$0xff]
  %v39 = vld [vmem:[%s1 + $0x20] sm:$0xff]
  %v40 = vld [vmem:[%s1 + $0x28] sm:$0xff]
  %v41 = vld [vmem:[%s1 + $0x30] sm:$0xff]
  %v42 = vld [vmem:[%s1 + $0x38] sm:$0xff]
  %v44 = vlaneseq
  %v45 = vshrl.u32 %v44, 7
  %v46 = vsub.s32 0, %v45
  %v47 = vrot.slane %v20, %v46
  %v48 = vlaneseq
  %v49 = vshrl.u32 %v48, 7
  %v50 = vsub.s32 4, %v49
  %v51 = vrot.slane %v20, %v50
  %v54 = vlaneseq
  %v55 = vshrl.u32 %v54, 7
  %v56 = vsub.s32 0, %v55
  %v57 = vrot.slane %v47, %v56
  %v58 = vlaneseq
  %v59 = vshrl.u32 %v58, 7
  %v60 = vsub.s32 0, %v59
  %v61 = vrot.slane %v51, %v60
  %vm62 = vcmask 261120
  %v64 = vsel %vm62, %v33, 0
  %v67 = vsel %vm62, %v34, 0
  %69 = vmatprep.subr.mxu0 %v36
  %70 = vmatpush1.msra.mxu0 %v35
  %71 = vmatprep.subr.mxu0 %v38
  %72 = vmatpush1.msra.mxu0 %v37
  %73 = vmatprep.subr.mxu0 %v40
  %74 = vmatpush1.msra.mxu0 %v39
  %75 = vmatprep.subr.mxu0 %v42
  %76 = vmatpush1.msra.mxu0 %v41
  %77 = vmatprep.subr.mxu0 0.0
  %78 = vmatpush1.msra.mxu0 0.0
  %79 = vmatprep.subr.mxu0 0.0
  %80 = vmatpush1.msra.mxu0 0.0
  %81 = vmatprep.subr.mxu0 0.0
  %82 = vmatpush1.msra.mxu0 0.0
  %83 = vmatprep.subr.mxu0 0.0
  %84 = vmatpush1.msra.mxu0 0.0
  %85 = vmatprep.subr.mxu0 0.0
  %86 = vmatpush1.msra.mxu0 0.0
  %87 = vmatprep.subr.mxu0 0.0
  %88 = vmatpush1.msra.mxu0 0.0
  %89 = vmatprep.subr.mxu0 0.0
  %90 = vmatpush1.msra.mxu0 0.0
  %91 = vmatprep.subr.mxu0 0.0
  %92 = vmatpush1.msra.mxu0 0.0
  %93 = vmatprep.subr.mxu0 0.0
  %94 = vmatpush1.msra.mxu0 0.0
  %95 = vmatprep.subr.mxu0 0.0
  %96 = vmatpush1.msra.mxu0 0.0
  %97 = vmatprep.subr.mxu0 0.0
  %98 = vmatpush1.msra.mxu0 0.0
  %99 = vmatprep.subr.mxu0 0.0
  %100 = vmatpush1.msra.mxu0 0.0
  %101 = vmatprep.subr.mxu0 0.0
  %102 = vmatpush1.msra.mxu0 0.0
  %103 = vmatprep.subr.mxu0 0.0
  %104 = vmatpush1.msra.mxu0 0.0
  %105 = vmatprep.subr.mxu0 0.0
  %106 = vmatpush1.msra.mxu0 0.0
  %107 = vmatprep.subr.mxu0 0.0
  %108 = vmatpush1.msra.mxu0 0.0
  %109 = vmatprep.subr.mxu0 0.0
  %110 = vmatpush1.msra.mxu0 0.0
  %111 = vmatprep.subr.mxu0 0.0
  %112 = vmatpush1.msra.mxu0 0.0
  %113 = vmatprep.subr.mxu0 0.0
  %114 = vmatpush1.msra.mxu0 0.0
  %115 = vmatprep.subr.mxu0 0.0
  %116 = vmatpush1.msra.mxu0 0.0
  %117 = vmatprep.subr.mxu0 0.0
  %118 = vmatpush1.msra.mxu0 0.0
  %119 = vmatprep.subr.mxu0 0.0
  %120 = vmatpush1.msra.mxu0 0.0
  %121 = vmatprep.subr.mxu0 0.0
  %122 = vmatpush1.msra.mxu0 0.0
  %123 = vmatprep.subr.mxu0 0.0
  %124 = vmatpush1.msra.mxu0 0.0
  %125 = vmatprep.subr.mxu0 0.0
  %126 = vmatpush1.msra.mxu0 0.0
  %127 = vmatprep.subr.mxu0 0.0
  %128 = vmatpush1.msra.mxu0 0.0
  %129 = vmatprep.subr.mxu0 0.0
  %130 = vmatpush1.msra.mxu0 0.0
  %131 = vmatprep.subr.mxu0 0.0
  %132 = vmatpush1.msra.mxu0 0.0
  %133 = vmatprep.mubr.f32.mxu0 0.0
  %134 = vmatmul.mubr.f32.gmra.mrb[0].mxu0 %v64
  %v135 = vpop.f32.mrb[0].mxu0
  %v136 = vadd.f32 %v57, %v135
  %v137 = vpop.f32.mrb[0].mxu0
  %v138 = vadd.f32 %v61, %v137
  %139 = vmatprep.mubr.f32.mxu0 0.0
  %140 = vmatmul.mubr.f32.gmra.mrb[0].mxu0 %v67
  %v141 = vpop.f32.mrb[0].mxu0
  %v142 = vadd.f32 %v57, %v141
  %v143 = vpop.f32.mrb[0].mxu0
  %v144 = vadd.f32 %v61, %v143
  %145 = vdwg.mxu0
  %v148 = vrot.slane %v142, 6
  %v149 = vrot.slane %v144, 6
  %150 = vrot.lane.b32.xlu0 %v148, 32
  %v151 = vpop.permute.xlu0 %150
  %152 = vrot.lane.b32.xlu0 %v149, 32
  %v153 = vpop.permute.xlu0 %152
  %v154 = vsel %vm62, %v151, %v153
  %v156 = vadd.f32 %v136, %v154
  %v157 = vlaneseq
  %v158 = vshrl.u32 %v157, 7
  %v159 = vsub.s32 1, %v158
  %v160 = vrot.slane %v20, %v159
  %v162 = vsel %vm62, 0.0, 0
  %164 = vmatprep.subr.mxu0 0.0
  %165 = vmatpush1.msra.mxu0 %v21
  %166 = vmatprep.subr.mxu0 0.0
  %167 = vmatpush1.msra.mxu0 %v24
  %168 = vmatprep.subr.mxu0 0.0
  %169 = vmatpush1.msra.mxu0 %v27
  %170 = vmatprep.subr.mxu0 0.0
  %171 = vmatpush1.msra.mxu0 %v30
  %172 = vmatprep.subr.mxu0 0.0
  %173 = vmatpush1.msra.mxu0 0.0
  %174 = vmatprep.subr.mxu0 0.0
  %175 = vmatpush1.msra.mxu0 0.0
  %176 = vmatprep.subr.mxu0 0.0
  %177 = vmatpush1.msra.mxu0 0.0
  %178 = vmatprep.subr.mxu0 0.0
  %179 = vmatpush1.msra.mxu0 0.0
  %180 = vmatprep.subr.mxu0 0.0
  %181 = vmatpush1.msra.mxu0 0.0
  %182 = vmatprep.subr.mxu0 0.0
  %183 = vmatpush1.msra.mxu0 0.0
  %184 = vmatprep.subr.mxu0 0.0
  %185 = vmatpush1.msra.mxu0 0.0
  %186 = vmatprep.subr.mxu0 0.0
  %187 = vmatpush1.msra.mxu0 0.0
  %188 = vmatprep.subr.mxu0 0.0
  %189 = vmatpush1.msra.mxu0 0.0
  %190 = vmatprep.subr.mxu0 0.0
  %191 = vmatpush1.msra.mxu0 0.0
  %192 = vmatprep.subr.mxu0 0.0
  %193 = vmatpush1.msra.mxu0 0.0
  %194 = vmatprep.subr.mxu0 0.0
  %195 = vmatpush1.msra.mxu0 0.0
  %196 = vmatprep.subr.mxu0 0.0
  %197 = vmatpush1.msra.mxu0 0.0
  %198 = vmatprep.subr.mxu0 0.0
  %199 = vmatpush1.msra.mxu0 0.0
  %200 = vmatprep.subr.mxu0 0.0
  %201 = vmatpush1.msra.mxu0 0.0
  %202 = vmatprep.subr.mxu0 0.0
  %203 = vmatpush1.msra.mxu0 0.0
  %204 = vmatprep.subr.mxu0 0.0
  %205 = vmatpush1.msra.mxu0 0.0
  %206 = vmatprep.subr.mxu0 0.0
  %207 = vmatpush1.msra.mxu0 0.0
  %208 = vmatprep.subr.mxu0 0.0
  %209 = vmatpush1.msra.mxu0 0.0
  %210 = vmatprep.subr.mxu0 0.0
  %211 = vmatpush1.msra.mxu0 0.0
  %212 = vmatprep.subr.mxu0 0.0
  %213 = vmatpush1.msra.mxu0 0.0
  %214 = vmatprep.subr.mxu0 0.0
  %215 = vmatpush1.msra.mxu0 0.0
  %216 = vmatprep.subr.mxu0 0.0
  %217 = vmatpush1.msra.mxu0 0.0
  %218 = vmatprep.subr.mxu0 0.0
  %219 = vmatpush1.msra.mxu0 0.0
  %220 = vmatprep.subr.mxu0 0.0
  %221 = vmatpush1.msra.mxu0 0.0
  %222 = vmatprep.subr.mxu0 0.0
  %223 = vmatpush1.msra.mxu0 0.0
  %224 = vmatprep.subr.mxu0 0.0
  %225 = vmatpush1.msra.mxu0 0.0
  %226 = vmatprep.subr.mxu0 0.0
  %227 = vmatpush1.msra.mxu0 0.0
  %228 = vmatprep.mubr.f32.mxu0 0.0
  %229 = vmatmul.mubr.f32.gmra.mrb[0].mxu0 %v162
  %v230 = vpop.f32.mrb[0].mxu0
  %v231 = vadd.f32 %v160, %v230
  %v232 = vpop.f32.mrb[0].mxu0
  %233 = vdwg.mxu0
  %v234 = vadd.f32 %v156, %v231
  %v235 = vxor.u32 %v234, 2147483648
  %v236 = vmul.f32 %v235, 1.442695
  %v237 = vpow.pop %v236
  %v238 = vadd.f32 %v237, 1.0
  %v239 = vrcp.pop %v238
  %v240 = vmul.f32 1.0, %v239
  %242 = vrot.lane.b32.xlu0 %v231, 64
  %v243 = vpop.permute.xlu0 %242
  %v245 = vmul.f32 %v240, %v243
  %247 = vrot.lane.b32.xlu0 %v245, 64
  %v248 = vpop.permute.xlu0 %247
  %v250 = vadd.f32 %v156, %v248
  %v251 = vtanh.pop %v250
  %v252 = vsub.f32 1.0, %v240
  %254 = vrot.lane.b32.xlu0 %v251, 96
  %v255 = vpop.permute.xlu0 %254
  %v257 = vmul.f32 %v252, %v255
  %v258 = vmul.f32 %v240, 0.0
  %v259 = vadd.f32 %v257, %v258
  %v260 = vrot.slane %v142, 2
  %v261 = vrot.slane %v144, 2
  %262 = vrot.lane.b32.xlu0 %v260, 32
  %v263 = vpop.permute.xlu0 %262
  %264 = vrot.lane.b32.xlu0 %v261, 32
  %v265 = vpop.permute.xlu0 %264
  %v266 = vsel %vm62, %v263, %v265
  %v268 = vadd.f32 %v136, %v266
  %270 = vrot.lane.b32.xlu0 %v259, 96
  %v271 = vpop.permute.xlu0 %270
  %v272 = vsel %vm62, %v271, 0
  %274 = vmatprep.subr.mxu0 0.0
  %275 = vmatpush1.msra.mxu0 %v21
  %276 = vmatprep.subr.mxu0 0.0
  %277 = vmatpush1.msra.mxu0 %v24
  %278 = vmatprep.subr.mxu0 0.0
  %279 = vmatpush1.msra.mxu0 %v27
  %280 = vmatprep.subr.mxu0 0.0
  %281 = vmatpush1.msra.mxu0 %v30
  %282 = vmatprep.subr.mxu0 0.0
  %283 = vmatpush1.msra.mxu0 0.0
  %284 = vmatprep.subr.mxu0 0.0
  %285 = vmatpush1.msra.mxu0 0.0
  %286 = vmatprep.subr.mxu0 0.0
  %287 = vmatpush1.msra.mxu0 0.0
  %288 = vmatprep.subr.mxu0 0.0
  %289 = vmatpush1.msra.mxu0 0.0
  %290 = vmatprep.subr.mxu0 0.0
  %291 = vmatpush1.msra.mxu0 0.0
  %292 = vmatprep.subr.mxu0 0.0
  %293 = vmatpush1.msra.mxu0 0.0
  %294 = vmatprep.subr.mxu0 0.0
  %295 = vmatpush1.msra.mxu0 0.0
  %296 = vmatprep.subr.mxu0 0.0
  %297 = vmatpush1.msra.mxu0 0.0
  %298 = vmatprep.subr.mxu0 0.0
  %299 = vmatpush1.msra.mxu0 0.0
  %300 = vmatprep.subr.mxu0 0.0
  %301 = vmatpush1.msra.mxu0 0.0
  %302 = vmatprep.subr.mxu0 0.0
  %303 = vmatpush1.msra.mxu0 0.0
  %304 = vmatprep.subr.mxu0 0.0
  %305 = vmatpush1.msra.mxu0 0.0
  %306 = vmatprep.subr.mxu0 0.0
  %307 = vmatpush1.msra.mxu0 0.0
  %308 = vmatprep.subr.mxu0 0.0
  %309 = vmatpush1.msra.mxu0 0.0
  %310 = vmatprep.subr.mxu0 0.0
  %311 = vmatpush1.msra.mxu0 0.0
  %312 = vmatprep.subr.mxu0 0.0
  %313 = vmatpush1.msra.mxu0 0.0
  %314 = vmatprep.subr.mxu0 0.0
  %315 = vmatpush1.msra.mxu0 0.0
  %316 = vmatprep.subr.mxu0 0.0
  %317 = vmatpush1.msra.mxu0 0.0
  %318 = vmatprep.subr.mxu0 0.0
  %319 = vmatpush1.msra.mxu0 0.0
  %320 = vmatprep.subr.mxu0 0.0
  %321 = vmatpush1.msra.mxu0 0.0
  %322 = vmatprep.subr.mxu0 0.0
  %323 = vmatpush1.msra.mxu0 0.0
  %324 = vmatprep.subr.mxu0 0.0
  %325 = vmatpush1.msra.mxu0 0.0
  %326 = vmatprep.subr.mxu0 0.0
  %327 = vmatpush1.msra.mxu0 0.0
  %328 = vmatprep.subr.mxu0 0.0
  %329 = vmatpush1.msra.mxu0 0.0
  %330 = vmatprep.subr.mxu0 0.0
  %331 = vmatpush1.msra.mxu0 0.0
  %332 = vmatprep.subr.mxu0 0.0
  %333 = vmatpush1.msra.mxu0 0.0
  %334 = vmatprep.subr.mxu0 0.0
  %335 = vmatpush1.msra.mxu0 0.0
  %336 = vmatprep.subr.mxu0 0.0
  %337 = vmatpush1.msra.mxu0 0.0
  %338 = vmatprep.mubr.f32.mxu0 0.0
  %339 = vmatmul.mubr.f32.gmra.mrb[0].mxu0 %v272
  %v340 = vpop.f32.mrb[0].mxu0
  %v341 = vadd.f32 %v160, %v340
  %v342 = vpop.f32.mrb[0].mxu0
  %343 = vdwg.mxu0
  %v345 = vrot.slane %v341, 6
  %v347 = vadd.f32 %v268, %v345
  %v348 = vxor.u32 %v347, 2147483648
  %v349 = vmul.f32 %v348, 1.442695
  %v350 = vpow.pop %v349
  %v351 = vadd.f32 %v350, 1.0
  %v352 = vrcp.pop %v351
  %v353 = vmul.f32 1.0, %v352
  %354 = vrot.lane.b32.xlu0 %v345, 64
  %v355 = vpop.permute.xlu0 %354
  %v357 = vmul.f32 %v353, %v355
  %359 = vrot.lane.b32.xlu0 %v357, 64
  %v360 = vpop.permute.xlu0 %359
  %v362 = vadd.f32 %v268, %v360
  %v363 = vtanh.pop %v362
  %v364 = vsub.f32 1.0, %v353
  %366 = vrot.lane.b32.xlu0 %v363, 96
  %v367 = vpop.permute.xlu0 %366
  %v369 = vmul.f32 %v364, %v367
  %v370 = vrot.slane %v259, 6
  %v372 = vmul.f32 %v353, %v370
  %v373 = vadd.f32 %v369, %v372
  %v375 = vrot.slane %v373, 2
  %376 = vrot.lane.b32.xlu0 %v375, 96
  %v377 = vpop.permute.xlu0 %376
  %v378 = vsel %vm62, %v377, 0
  %380 = vmatprep.subr.mxu0 0.0
  %381 = vmatpush1.msra.mxu0 %v21
  %382 = vmatprep.subr.mxu0 0.0
  %383 = vmatpush1.msra.mxu0 %v24
  %384 = vmatprep.subr.mxu0 0.0
  %385 = vmatpush1.msra.mxu0 %v27
  %386 = vmatprep.subr.mxu0 0.0
  %387 = vmatpush1.msra.mxu0 %v30
  %388 = vmatprep.subr.mxu0 0.0
  %389 = vmatpush1.msra.mxu0 0.0
  %390 = vmatprep.subr.mxu0 0.0
  %391 = vmatpush1.msra.mxu0 0.0
  %392 = vmatprep.subr.mxu0 0.0
  %393 = vmatpush1.msra.mxu0 0.0
  %394 = vmatprep.subr.mxu0 0.0
  %395 = vmatpush1.msra.mxu0 0.0
  %396 = vmatprep.subr.mxu0 0.0
  %397 = vmatpush1.msra.mxu0 0.0
  %398 = vmatprep.subr.mxu0 0.0
  %399 = vmatpush1.msra.mxu0 0.0
  %400 = vmatprep.subr.mxu0 0.0
  %401 = vmatpush1.msra.mxu0 0.0
  %402 = vmatprep.subr.mxu0 0.0
  %403 = vmatpush1.msra.mxu0 0.0
  %404 = vmatprep.subr.mxu0 0.0
  %405 = vmatpush1.msra.mxu0 0.0
  %406 = vmatprep.subr.mxu0 0.0
  %407 = vmatpush1.msra.mxu0 0.0
  %408 = vmatprep.subr.mxu0 0.0
  %409 = vmatpush1.msra.mxu0 0.0
  %410 = vmatprep.subr.mxu0 0.0
  %411 = vmatpush1.msra.mxu0 0.0
  %412 = vmatprep.subr.mxu0 0.0
  %413 = vmatpush1.msra.mxu0 0.0
  %414 = vmatprep.subr.mxu0 0.0
  %415 = vmatpush1.msra.mxu0 0.0
  %416 = vmatprep.subr.mxu0 0.0
  %417 = vmatpush1.msra.mxu0 0.0
  %418 = vmatprep.subr.mxu0 0.0
  %419 = vmatpush1.msra.mxu0 0.0
  %420 = vmatprep.subr.mxu0 0.0
  %421 = vmatpush1.msra.mxu0 0.0
  %422 = vmatprep.subr.mxu0 0.0
  %423 = vmatpush1.msra.mxu0 0.0
  %424 = vmatprep.subr.mxu0 0.0
  %425 = vmatpush1.msra.mxu0 0.0
  %426 = vmatprep.subr.mxu0 0.0
  %427 = vmatpush1.msra.mxu0 0.0
  %428 = vmatprep.subr.mxu0 0.0
  %429 = vmatpush1.msra.mxu0 0.0
  %430 = vmatprep.subr.mxu0 0.0
  %431 = vmatpush1.msra.mxu0 0.0
  %432 = vmatprep.subr.mxu0 0.0
  %433 = vmatpush1.msra.mxu0 0.0
  %434 = vmatprep.subr.mxu0 0.0
  %435 = vmatpush1.msra.mxu0 0.0
  %436 = vmatprep.subr.mxu0 0.0
  %437 = vmatpush1.msra.mxu0 0.0
  %438 = vmatprep.subr.mxu0 0.0
  %439 = vmatpush1.msra.mxu0 0.0
  %440 = vmatprep.subr.mxu0 0.0
  %441 = vmatpush1.msra.mxu0 0.0
  %442 = vmatprep.subr.mxu0 0.0
  %443 = vmatpush1.msra.mxu0 0.0
  %444 = vmatprep.mubr.f32.mxu0 0.0
  %445 = vmatmul.mubr.f32.gmra.mrb[0].mxu0 %v378
  %v446 = vpop.f32.mrb[0].mxu0
  %v447 = vadd.f32 %v160, %v446
  %v448 = vpop.f32.mrb[0].mxu0
  %449 = vdwg.mxu0
  %v451 = vrot.slane %v447, 4
  %v453 = vadd.f32 %v156, %v451
  %v454 = vxor.u32 %v453, 2147483648
  %v455 = vmul.f32 %v454, 1.442695
  %v456 = vpow.pop %v455
  %v457 = vadd.f32 %v456, 1.0
  %v458 = vrcp.pop %v457
  %v459 = vmul.f32 1.0, %v458
  %460 = vrot.lane.b32.xlu0 %v451, 64
  %v461 = vpop.permute.xlu0 %460
  %v463 = vmul.f32 %v459, %v461
  %465 = vrot.lane.b32.xlu0 %v463, 64
  %v466 = vpop.permute.xlu0 %465
  %v468 = vadd.f32 %v156, %v466
  %v469 = vtanh.pop %v468
  %v470 = vsub.f32 1.0, %v459
  %472 = vrot.lane.b32.xlu0 %v469, 96
  %v473 = vpop.permute.xlu0 %472
  %v475 = vmul.f32 %v470, %v473
  %v476 = vrot.slane %v373, 6
  %v478 = vmul.f32 %v459, %v476
  %v479 = vadd.f32 %v475, %v478
  %v481 = vrot.slane %v479, 4
  %482 = vrot.lane.b32.xlu0 %v481, 96
  %v483 = vpop.permute.xlu0 %482
  %v484 = vsel %vm62, %v483, 0
  %486 = vmatprep.subr.mxu0 0.0
  %487 = vmatpush1.msra.mxu0 %v21
  %488 = vmatprep.subr.mxu0 0.0
  %489 = vmatpush1.msra.mxu0 %v24
  %490 = vmatprep.subr.mxu0 0.0
  %491 = vmatpush1.msra.mxu0 %v27
  %492 = vmatprep.subr.mxu0 0.0
  %493 = vmatpush1.msra.mxu0 %v30
  %494 = vmatprep.subr.mxu0 0.0
  %495 = vmatpush1.msra.mxu0 0.0
  %496 = vmatprep.subr.mxu0 0.0
  %497 = vmatpush1.msra.mxu0 0.0
  %498 = vmatprep.subr.mxu0 0.0
  %499 = vmatpush1.msra.mxu0 0.0
  %500 = vmatprep.subr.mxu0 0.0
  %501 = vmatpush1.msra.mxu0 0.0
  %502 = vmatprep.subr.mxu0 0.0
  %503 = vmatpush1.msra.mxu0 0.0
  %504 = vmatprep.subr.mxu0 0.0
  %505 = vmatpush1.msra.mxu0 0.0
  %506 = vmatprep.subr.mxu0 0.0
  %507 = vmatpush1.msra.mxu0 0.0
  %508 = vmatprep.subr.mxu0 0.0
  %509 = vmatpush1.msra.mxu0 0.0
  %510 = vmatprep.subr.mxu0 0.0
  %511 = vmatpush1.msra.mxu0 0.0
  %512 = vmatprep.subr.mxu0 0.0
  %513 = vmatpush1.msra.mxu0 0.0
  %514 = vmatprep.subr.mxu0 0.0
  %515 = vmatpush1.msra.mxu0 0.0
  %516 = vmatprep.subr.mxu0 0.0
  %517 = vmatpush1.msra.mxu0 0.0
  %518 = vmatprep.subr.mxu0 0.0
  %519 = vmatpush1.msra.mxu0 0.0
  %520 = vmatprep.subr.mxu0 0.0
  %521 = vmatpush1.msra.mxu0 0.0
  %522 = vmatprep.subr.mxu0 0.0
  %523 = vmatpush1.msra.mxu0 0.0
  %524 = vmatprep.subr.mxu0 0.0
  %525 = vmatpush1.msra.mxu0 0.0
  %526 = vmatprep.subr.mxu0 0.0
  %527 = vmatpush1.msra.mxu0 0.0
  %528 = vmatprep.subr.mxu0 0.0
  %529 = vmatpush1.msra.mxu0 0.0
  %530 = vmatprep.subr.mxu0 0.0
  %531 = vmatpush1.msra.mxu0 0.0
  %532 = vmatprep.subr.mxu0 0.0
  %533 = vmatpush1.msra.mxu0 0.0
  %534 = vmatprep.subr.mxu0 0.0
  %535 = vmatpush1.msra.mxu0 0.0
  %536 = vmatprep.subr.mxu0 0.0
  %537 = vmatpush1.msra.mxu0 0.0
  %538 = vmatprep.subr.mxu0 0.0
  %539 = vmatpush1.msra.mxu0 0.0
  %540 = vmatprep.subr.mxu0 0.0
  %541 = vmatpush1.msra.mxu0 0.0
  %542 = vmatprep.subr.mxu0 0.0
  %543 = vmatpush1.msra.mxu0 0.0
  %544 = vmatprep.subr.mxu0 0.0
  %545 = vmatpush1.msra.mxu0 0.0
  %546 = vmatprep.subr.mxu0 0.0
  %547 = vmatpush1.msra.mxu0 0.0
  %548 = vmatprep.subr.mxu0 0.0
  %549 = vmatpush1.msra.mxu0 0.0
  %550 = vmatprep.mubr.f32.mxu0 0.0
  %551 = vmatmul.mubr.f32.gmra.mrb[0].mxu0 %v484
  %v552 = vpop.f32.mrb[0].mxu0
  %v553 = vadd.f32 %v160, %v552
  %v554 = vpop.f32.mrb[0].mxu0
  %555 = vdwg.mxu0
  %v557 = vrot.slane %v553, 2
  %v559 = vadd.f32 %v268, %v557
  %v560 = vxor.u32 %v559, 2147483648
  %v561 = vmul.f32 %v560, 1.442695
  %v562 = vpow.pop %v561
  %v563 = vadd.f32 %v562, 1.0
  %v564 = vrcp.pop %v563
  %v565 = vmul.f32 1.0, %v564
  %566 = vrot.lane.b32.xlu0 %v557, 64
  %v567 = vpop.permute.xlu0 %566
  %v569 = vmul.f32 %v565, %v567
  %571 = vrot.lane.b32.xlu0 %v569, 64
  %v572 = vpop.permute.xlu0 %571
  %v574 = vadd.f32 %v268, %v572
  %v575 = vtanh.pop %v574
  %v576 = vsub.f32 1.0, %v565
  %578 = vrot.lane.b32.xlu0 %v575, 96
  %v579 = vpop.permute.xlu0 %578
  %v581 = vmul.f32 %v576, %v579
  %v582 = vrot.slane %v479, 6
  %v584 = vmul.f32 %v565, %v582
  %v585 = vadd.f32 %v581, %v584
  %v588 = vrot.slane %v136, 6
  %v589 = vrot.slane %v138, 6
  %590 = vrot.lane.b32.xlu0 %v588, 32
  %v591 = vpop.permute.xlu0 %590
  %592 = vrot.lane.b32.xlu0 %v589, 32
  %v593 = vpop.permute.xlu0 %592
  %v594 = vsel %vm62, %v591, %v593
  %v596 = vadd.f32 %v142, %v594
  %v598 = vrot.slane %v585, 6
  %599 = vrot.lane.b32.xlu0 %v598, 96
  %v600 = vpop.permute.xlu0 %599
  %v601 = vsel %vm62, %v600, 0
  %603 = vmatprep.subr.mxu0 0.0
  %604 = vmatpush1.msra.mxu0 %v21
  %605 = vmatprep.subr.mxu0 0.0
  %606 = vmatpush1.msra.mxu0 %v24
  %607 = vmatprep.subr.mxu0 0.0
  %608 = vmatpush1.msra.mxu0 %v27
  %609 = vmatprep.subr.mxu0 0.0
  %610 = vmatpush1.msra.mxu0 %v30
  %611 = vmatprep.subr.mxu0 0.0
  %612 = vmatpush1.msra.mxu0 0.0
  %613 = vmatprep.subr.mxu0 0.0
  %614 = vmatpush1.msra.mxu0 0.0
  %615 = vmatprep.subr.mxu0 0.0
  %616 = vmatpush1.msra.mxu0 0.0
  %617 = vmatprep.subr.mxu0 0.0
  %618 = vmatpush1.msra.mxu0 0.0
  %619 = vmatprep.subr.mxu0 0.0
  %620 = vmatpush1.msra.mxu0 0.0
  %621 = vmatprep.subr.mxu0 0.0
  %622 = vmatpush1.msra.mxu0 0.0
  %623 = vmatprep.subr.mxu0 0.0
  %624 = vmatpush1.msra.mxu0 0.0
  %625 = vmatprep.subr.mxu0 0.0
  %626 = vmatpush1.msra.mxu0 0.0
  %627 = vmatprep.subr.mxu0 0.0
  %628 = vmatpush1.msra.mxu0 0.0
  %629 = vmatprep.subr.mxu0 0.0
  %630 = vmatpush1.msra.mxu0 0.0
  %631 = vmatprep.subr.mxu0 0.0
  %632 = vmatpush1.msra.mxu0 0.0
  %633 = vmatprep.subr.mxu0 0.0
  %634 = vmatpush1.msra.mxu0 0.0
  %635 = vmatprep.subr.mxu0 0.0
  %636 = vmatpush1.msra.mxu0 0.0
  %637 = vmatprep.subr.mxu0 0.0
  %638 = vmatpush1.msra.mxu0 0.0
  %639 = vmatprep.subr.mxu0 0.0
  %640 = vmatpush1.msra.mxu0 0.0
  %641 = vmatprep.subr.mxu0 0.0
  %642 = vmatpush1.msra.mxu0 0.0
  %643 = vmatprep.subr.mxu0 0.0
  %644 = vmatpush1.msra.mxu0 0.0
  %645 = vmatprep.subr.mxu0 0.0
  %646 = vmatpush1.msra.mxu0 0.0
  %647 = vmatprep.subr.mxu0 0.0
  %648 = vmatpush1.msra.mxu0 0.0
  %649 = vmatprep.subr.mxu0 0.0
  %650 = vmatpush1.msra.mxu0 0.0
  %651 = vmatprep.subr.mxu0 0.0
  %652 = vmatpush1.msra.mxu0 0.0
  %653 = vmatprep.subr.mxu0 0.0
  %654 = vmatpush1.msra.mxu0 0.0
  %655 = vmatprep.subr.mxu0 0.0
  %656 = vmatpush1.msra.mxu0 0.0
  %657 = vmatprep.subr.mxu0 0.0
  %658 = vmatpush1.msra.mxu0 0.0
  %659 = vmatprep.subr.mxu0 0.0
  %660 = vmatpush1.msra.mxu0 0.0
  %661 = vmatprep.subr.mxu0 0.0
  %662 = vmatpush1.msra.mxu0 0.0
  %663 = vmatprep.subr.mxu0 0.0
  %664 = vmatpush1.msra.mxu0 0.0
  %665 = vmatprep.subr.mxu0 0.0
  %666 = vmatpush1.msra.mxu0 0.0
  %667 = vmatprep.mubr.f32.mxu0 0.0
  %668 = vmatmul.mubr.f32.gmra.mrb[0].mxu0 %v601
  %v669 = vpop.f32.mrb[0].mxu0
  %v670 = vadd.f32 %v160, %v669
  %v671 = vpop.f32.mrb[0].mxu0
  %672 = vdwg.mxu0
  %v673 = vadd.f32 %v596, %v670
  %v674 = vxor.u32 %v673, 2147483648
  %v675 = vmul.f32 %v674, 1.442695
  %v676 = vpow.pop %v675
  %v677 = vadd.f32 %v676, 1.0
  %v678 = vrcp.pop %v677
  %v679 = vmul.f32 1.0, %v678
  %681 = vrot.lane.b32.xlu0 %v670, 64
  %v682 = vpop.permute.xlu0 %681
  %v684 = vmul.f32 %v679, %v682
  %686 = vrot.lane.b32.xlu0 %v684, 64
  %v687 = vpop.permute.xlu0 %686
  %v689 = vadd.f32 %v596, %v687
  %v690 = vtanh.pop %v689
  %v691 = vsub.f32 1.0, %v679
  %693 = vrot.lane.b32.xlu0 %v690, 96
  %v694 = vpop.permute.xlu0 %693
  %v696 = vmul.f32 %v691, %v694
  %v698 = vmul.f32 %v679, %v598
  %v699 = vadd.f32 %v696, %v698
  %v700 = vrot.slane %v136, 2
  %v701 = vrot.slane %v138, 2
  %702 = vrot.lane.b32.xlu0 %v700, 32
  %v703 = vpop.permute.xlu0 %702
  %704 = vrot.lane.b32.xlu0 %v701, 32
  %v705 = vpop.permute.xlu0 %704
  %v706 = vsel %vm62, %v703, %v705
  %v708 = vadd.f32 %v142, %v706
  %710 = vrot.lane.b32.xlu0 %v699, 96
  %v711 = vpop.permute.xlu0 %710
  %v712 = vsel %vm62, %v711, 0
  %714 = vmatprep.subr.mxu0 0.0
  %715 = vmatpush1.msra.mxu0 %v21
  %716 = vmatprep.subr.mxu0 0.0
  %717 = vmatpush1.msra.mxu0 %v24
  %718 = vmatprep.subr.mxu0 0.0
  %719 = vmatpush1.msra.mxu0 %v27
  %720 = vmatprep.subr.mxu0 0.0
  %721 = vmatpush1.msra.mxu0 %v30
  %722 = vmatprep.subr.mxu0 0.0
  %723 = vmatpush1.msra.mxu0 0.0
  %724 = vmatprep.subr.mxu0 0.0
  %725 = vmatpush1.msra.mxu0 0.0
  %726 = vmatprep.subr.mxu0 0.0
  %727 = vmatpush1.msra.mxu0 0.0
  %728 = vmatprep.subr.mxu0 0.0
  %729 = vmatpush1.msra.mxu0 0.0
  %730 = vmatprep.subr.mxu0 0.0
  %731 = vmatpush1.msra.mxu0 0.0
  %732 = vmatprep.subr.mxu0 0.0
  %733 = vmatpush1.msra.mxu0 0.0
  %734 = vmatprep.subr.mxu0 0.0
  %735 = vmatpush1.msra.mxu0 0.0
  %736 = vmatprep.subr.mxu0 0.0
  %737 = vmatpush1.msra.mxu0 0.0
  %738 = vmatprep.subr.mxu0 0.0
  %739 = vmatpush1.msra.mxu0 0.0
  %740 = vmatprep.subr.mxu0 0.0
  %741 = vmatpush1.msra.mxu0 0.0
  %742 = vmatprep.subr.mxu0 0.0
  %743 = vmatpush1.msra.mxu0 0.0
  %744 = vmatprep.subr.mxu0 0.0
  %745 = vmatpush1.msra.mxu0 0.0
  %746 = vmatprep.subr.mxu0 0.0
  %747 = vmatpush1.msra.mxu0 0.0
  %748 = vmatprep.subr.mxu0 0.0
  %749 = vmatpush1.msra.mxu0 0.0
  %750 = vmatprep.subr.mxu0 0.0
  %751 = vmatpush1.msra.mxu0 0.0
  %752 = vmatprep.subr.mxu0 0.0
  %753 = vmatpush1.msra.mxu0 0.0
  %754 = vmatprep.subr.mxu0 0.0
  %755 = vmatpush1.msra.mxu0 0.0
  %756 = vmatprep.subr.mxu0 0.0
  %757 = vmatpush1.msra.mxu0 0.0
  %758 = vmatprep.subr.mxu0 0.0
  %759 = vmatpush1.msra.mxu0 0.0
  %760 = vmatprep.subr.mxu0 0.0
  %761 = vmatpush1.msra.mxu0 0.0
  %762 = vmatprep.subr.mxu0 0.0
  %763 = vmatpush1.msra.mxu0 0.0
  %764 = vmatprep.subr.mxu0 0.0
  %765 = vmatpush1.msra.mxu0 0.0
  %766 = vmatprep.subr.mxu0 0.0
  %767 = vmatpush1.msra.mxu0 0.0
  %768 = vmatprep.subr.mxu0 0.0
  %769 = vmatpush1.msra.mxu0 0.0
  %770 = vmatprep.subr.mxu0 0.0
  %771 = vmatpush1.msra.mxu0 0.0
  %772 = vmatprep.subr.mxu0 0.0
  %773 = vmatpush1.msra.mxu0 0.0
  %774 = vmatprep.subr.mxu0 0.0
  %775 = vmatpush1.msra.mxu0 0.0
  %776 = vmatprep.subr.mxu0 0.0
  %777 = vmatpush1.msra.mxu0 0.0
  %778 = vmatprep.mubr.f32.mxu0 0.0
  %779 = vmatmul.mubr.f32.gmra.mrb[0].mxu0 %v712
  %v780 = vpop.f32.mrb[0].mxu0
  %v781 = vadd.f32 %v160, %v780
  %v782 = vpop.f32.mrb[0].mxu0
  %783 = vdwg.mxu0
  %v785 = vrot.slane %v781, 6
  %v787 = vadd.f32 %v708, %v785
  %v788 = vxor.u32 %v787, 2147483648
  %v789 = vmul.f32 %v788, 1.442695
  %v790 = vpow.pop %v789
  %v791 = vadd.f32 %v790, 1.0
  %v792 = vrcp.pop %v791
  %v793 = vmul.f32 1.0, %v792
  %794 = vrot.lane.b32.xlu0 %v785, 64
  %v795 = vpop.permute.xlu0 %794
  %v797 = vmul.f32 %v793, %v795
  %799 = vrot.lane.b32.xlu0 %v797, 64
  %v800 = vpop.permute.xlu0 %799
  %v802 = vadd.f32 %v708, %v800
  %v803 = vtanh.pop %v802
  %v804 = vsub.f32 1.0, %v793
  %806 = vrot.lane.b32.xlu0 %v803, 96
  %v807 = vpop.permute.xlu0 %806
  %v809 = vmul.f32 %v804, %v807
  %v810 = vrot.slane %v699, 6
  %v812 = vmul.f32 %v793, %v810
  %v813 = vadd.f32 %v809, %v812
  %v815 = vrot.slane %v813, 2
  %816 = vrot.lane.b32.xlu0 %v815, 96
  %v817 = vpop.permute.xlu0 %816
  %v818 = vsel %vm62, %v817, 0
  %820 = vmatprep.subr.mxu0 0.0
  %821 = vmatpush1.msra.mxu0 %v21
  %822 = vmatprep.subr.mxu0 0.0
  %823 = vmatpush1.msra.mxu0 %v24
  %824 = vmatprep.subr.mxu0 0.0
  %825 = vmatpush1.msra.mxu0 %v27
  %826 = vmatprep.subr.mxu0 0.0
  %827 = vmatpush1.msra.mxu0 %v30
  %828 = vmatprep.subr.mxu0 0.0
  %829 = vmatpush1.msra.mxu0 0.0
  %830 = vmatprep.subr.mxu0 0.0
  %831 = vmatpush1.msra.mxu0 0.0
  %832 = vmatprep.subr.mxu0 0.0
  %833 = vmatpush1.msra.mxu0 0.0
  %834 = vmatprep.subr.mxu0 0.0
  %835 = vmatpush1.msra.mxu0 0.0
  %836 = vmatprep.subr.mxu0 0.0
  %837 = vmatpush1.msra.mxu0 0.0
  %838 = vmatprep.subr.mxu0 0.0
  %839 = vmatpush1.msra.mxu0 0.0
  %840 = vmatprep.subr.mxu0 0.0
  %841 = vmatpush1.msra.mxu0 0.0
  %842 = vmatprep.subr.mxu0 0.0
  %843 = vmatpush1.msra.mxu0 0.0
  %844 = vmatprep.subr.mxu0 0.0
  %845 = vmatpush1.msra.mxu0 0.0
  %846 = vmatprep.subr.mxu0 0.0
  %847 = vmatpush1.msra.mxu0 0.0
  %848 = vmatprep.subr.mxu0 0.0
  %849 = vmatpush1.msra.mxu0 0.0
  %850 = vmatprep.subr.mxu0 0.0
  %851 = vmatpush1.msra.mxu0 0.0
  %852 = vmatprep.subr.mxu0 0.0
  %853 = vmatpush1.msra.mxu0 0.0
  %854 = vmatprep.subr.mxu0 0.0
  %855 = vmatpush1.msra.mxu0 0.0
  %856 = vmatprep.subr.mxu0 0.0
  %857 = vmatpush1.msra.mxu0 0.0
  %858 = vmatprep.subr.mxu0 0.0
  %859 = vmatpush1.msra.mxu0 0.0
  %860 = vmatprep.subr.mxu0 0.0
  %861 = vmatpush1.msra.mxu0 0.0
  %862 = vmatprep.subr.mxu0 0.0
  %863 = vmatpush1.msra.mxu0 0.0
  %864 = vmatprep.subr.mxu0 0.0
  %865 = vmatpush1.msra.mxu0 0.0
  %866 = vmatprep.subr.mxu0 0.0
  %867 = vmatpush1.msra.mxu0 0.0
  %868 = vmatprep.subr.mxu0 0.0
  %869 = vmatpush1.msra.mxu0 0.0
  %870 = vmatprep.subr.mxu0 0.0
  %871 = vmatpush1.msra.mxu0 0.0
  %872 = vmatprep.subr.mxu0 0.0
  %873 = vmatpush1.msra.mxu0 0.0
  %874 = vmatprep.subr.mxu0 0.0
  %875 = vmatpush1.msra.mxu0 0.0
  %876 = vmatprep.subr.mxu0 0.0
  %877 = vmatpush1.msra.mxu0 0.0
  %878 = vmatprep.subr.mxu0 0.0
  %879 = vmatpush1.msra.mxu0 0.0
  %880 = vmatprep.subr.mxu0 0.0
  %881 = vmatpush1.msra.mxu0 0.0
  %882 = vmatprep.subr.mxu0 0.0
  %883 = vmatpush1.msra.mxu0 0.0
  %884 = vmatprep.mubr.f32.mxu0 0.0
  %885 = vmatmul.mubr.f32.gmra.mrb[0].mxu0 %v818
  %v886 = vpop.f32.mrb[0].mxu0
  %v887 = vadd.f32 %v160, %v886
  %v888 = vpop.f32.mrb[0].mxu0
  %889 = vdwg.mxu0
  %v891 = vrot.slane %v887, 4
  %v893 = vadd.f32 %v596, %v891
  %v894 = vxor.u32 %v893, 2147483648
  %v895 = vmul.f32 %v894, 1.442695
  %v896 = vpow.pop %v895
  %v897 = vadd.f32 %v896, 1.0
  %v898 = vrcp.pop %v897
  %v899 = vmul.f32 1.0, %v898
  %900 = vrot.lane.b32.xlu0 %v891, 64
  %v901 = vpop.permute.xlu0 %900
  %v903 = vmul.f32 %v899, %v901
  %905 = vrot.lane.b32.xlu0 %v903, 64
  %v906 = vpop.permute.xlu0 %905
  %v908 = vadd.f32 %v596, %v906
  %v909 = vtanh.pop %v908
  %v910 = vsub.f32 1.0, %v899
  %912 = vrot.lane.b32.xlu0 %v909, 96
  %v913 = vpop.permute.xlu0 %912
  %v915 = vmul.f32 %v910, %v913
  %v916 = vrot.slane %v813, 6
  %v918 = vmul.f32 %v899, %v916
  %v919 = vadd.f32 %v915, %v918
  %v921 = vrot.slane %v919, 4
  %922 = vrot.lane.b32.xlu0 %v921, 96
  %v923 = vpop.permute.xlu0 %922
  %v924 = vsel %vm62, %v923, 0
  %926 = vmatprep.subr.mxu0 0.0
  %927 = vmatpush1.msra.mxu0 %v21
  %928 = vmatprep.subr.mxu0 0.0
  %929 = vmatpush1.msra.mxu0 %v24
  %930 = vmatprep.subr.mxu0 0.0
  %931 = vmatpush1.msra.mxu0 %v27
  %932 = vmatprep.subr.mxu0 0.0
  %933 = vmatpush1.msra.mxu0 %v30
  %934 = vmatprep.subr.mxu0 0.0
  %935 = vmatpush1.msra.mxu0 0.0
  %936 = vmatprep.subr.mxu0 0.0
  %937 = vmatpush1.msra.mxu0 0.0
  %938 = vmatprep.subr.mxu0 0.0
  %939 = vmatpush1.msra.mxu0 0.0
  %940 = vmatprep.subr.mxu0 0.0
  %941 = vmatpush1.msra.mxu0 0.0
  %942 = vmatprep.subr.mxu0 0.0
  %943 = vmatpush1.msra.mxu0 0.0
  %944 = vmatprep.subr.mxu0 0.0
  %945 = vmatpush1.msra.mxu0 0.0
  %946 = vmatprep.subr.mxu0 0.0
  %947 = vmatpush1.msra.mxu0 0.0
  %948 = vmatprep.subr.mxu0 0.0
  %949 = vmatpush1.msra.mxu0 0.0
  %950 = vmatprep.subr.mxu0 0.0
  %951 = vmatpush1.msra.mxu0 0.0
  %952 = vmatprep.subr.mxu0 0.0
  %953 = vmatpush1.msra.mxu0 0.0
  %954 = vmatprep.subr.mxu0 0.0
  %955 = vmatpush1.msra.mxu0 0.0
  %956 = vmatprep.subr.mxu0 0.0
  %957 = vmatpush1.msra.mxu0 0.0
  %958 = vmatprep.subr.mxu0 0.0
  %959 = vmatpush1.msra.mxu0 0.0
  %960 = vmatprep.subr.mxu0 0.0
  %961 = vmatpush1.msra.mxu0 0.0
  %962 = vmatprep.subr.mxu0 0.0
  %963 = vmatpush1.msra.mxu0 0.0
  %964 = vmatprep.subr.mxu0 0.0
  %965 = vmatpush1.msra.mxu0 0.0
  %966 = vmatprep.subr.mxu0 0.0
  %967 = vmatpush1.msra.mxu0 0.0
  %968 = vmatprep.subr.mxu0 0.0
  %969 = vmatpush1.msra.mxu0 0.0
  %970 = vmatprep.subr.mxu0 0.0
  %971 = vmatpush1.msra.mxu0 0.0
  %972 = vmatprep.subr.mxu0 0.0
  %973 = vmatpush1.msra.mxu0 0.0
  %974 = vmatprep.subr.mxu0 0.0
  %975 = vmatpush1.msra.mxu0 0.0
  %976 = vmatprep.subr.mxu0 0.0
  %977 = vmatpush1.msra.mxu0 0.0
  %978 = vmatprep.subr.mxu0 0.0
  %979 = vmatpush1.msra.mxu0 0.0
  %980 = vmatprep.subr.mxu0 0.0
  %981 = vmatpush1.msra.mxu0 0.0
  %982 = vmatprep.subr.mxu0 0.0
  %983 = vmatpush1.msra.mxu0 0.0
  %984 = vmatprep.subr.mxu0 0.0
  %985 = vmatpush1.msra.mxu0 0.0
  %986 = vmatprep.subr.mxu0 0.0
  %987 = vmatpush1.msra.mxu0 0.0
  %988 = vmatprep.subr.mxu0 0.0
  %989 = vmatpush1.msra.mxu0 0.0
  %990 = vmatprep.mubr.f32.mxu0 0.0
  %991 = vmatmul.mubr.f32.gmra.mrb[0].mxu0 %v924
  %v992 = vpop.f32.mrb[0].mxu0
  %v993 = vadd.f32 %v160, %v992
  %v994 = vpop.f32.mrb[0].mxu0
  %995 = vdwg.mxu0
  %v997 = vrot.slane %v993, 2
  %v999 = vadd.f32 %v708, %v997
  %v1000 = vxor.u32 %v999, 2147483648
  %v1001 = vmul.f32 %v1000, 1.442695
  %v1002 = vpow.pop %v1001
  %v1003 = vadd.f32 %v1002, 1.0
  %v1004 = vrcp.pop %v1003
  %v1005 = vmul.f32 1.0, %v1004
  %1006 = vrot.lane.b32.xlu0 %v997, 64
  %v1007 = vpop.permute.xlu0 %1006
  %v1009 = vmul.f32 %v1005, %v1007
  %1011 = vrot.lane.b32.xlu0 %v1009, 64
  %v1012 = vpop.permute.xlu0 %1011
  %v1014 = vadd.f32 %v708, %v1012
  %v1015 = vtanh.pop %v1014
  %v1016 = vsub.f32 1.0, %v1005
  %1018 = vrot.lane.b32.xlu0 %v1015, 96
  %v1019 = vpop.permute.xlu0 %1018
  %v1021 = vmul.f32 %v1016, %v1019
  %v1022 = vrot.slane %v919, 6
  %v1024 = vmul.f32 %v1005, %v1022
  %v1025 = vadd.f32 %v1021, %v1024
  %vm1026 = vcmask 1041408
  %v1027 = vsel %vm1026, %v259, %v373
  %vm1028 = vcmask 1043456
  %v1029 = vsel %vm1028, %v1027, %v479
  %vm1030 = vcmask 1045504
  %v1031 = vsel %vm1030, %v1029, %v585
  %v1032 = vsel %vm1026, %v699, %v813
  %v1033 = vsel %vm1028, %v1032, %v919
  %v1034 = vsel %vm1030, %v1033, %v1025
  %v1036 = vrot.slane %v1025, 6
  %v1038 = vrot.slane %v919, 2
  %v1040 = vrot.slane %v699, 2
  %v1042 = vrot.slane %v479, 2
  %v1044 = vrot.slane %v259, 2
  %v1046 = vsel %vm1026, %v1036, %v1038
  %v1047 = vsel %vm1028, %v1046, %v916
  %v1048 = vsel %vm1030, %v1047, %v1040
  %v1049 = vsel %vm1026, %v598, %v1042
  %v1050 = vsel %vm1028, %v1049, %v476
  %v1051 = vsel %vm1030, %v1050, %v1044
  %v1052 = vlaneseq
  %v1053 = vand.u32 %v1052, 127
  %vm1054 = vcmp.lt.s32.totalorder %v1053, 16
  %1057 = vrot.lane.b32.xlu0 %v1031, 96
  %v1058 = vpop.permute.xlu0 %1057
  %1059 = vrot.lane.b32.xlu0 %v1034, 96
  %v1060 = vpop.permute.xlu0 %1059
  %1065 = vrot.lane.b32.xlu0 %v1048, 96
  %v1066 = vpop.permute.xlu0 %1065
  %1067 = vrot.lane.b32.xlu0 %v1051, 96
  %v1068 = vpop.permute.xlu0 %1067
  %v1071 = vsel %vm1054, %v1058, %v1066
  %v1072 = vsel %vm1054, %v1060, %v1068
  %v1073 = vlaneseq
  %v1074 = vshrl.u32 %v1073, 7
  %v1075 = vsub.s32 2, %v1074
  %v1076 = vrot.slane %v20, %v1075
  %v1077 = vlaneseq
  %v1078 = vshrl.u32 %v1077, 7
  %v1079 = vsub.s32 6, %v1078
  %v1080 = vrot.slane %v20, %v1079
  %v1083 = vlaneseq
  %v1084 = vshrl.u32 %v1083, 7
  %v1085 = vsub.s32 2, %v1084
  %v1086 = vrot.slane %v1076, %v1085
  %v1087 = vlaneseq
  %v1088 = vshrl.u32 %v1087, 7
  %v1089 = vsub.s32 2, %v1088
  %v1090 = vrot.slane %v1080, %v1089
  %1103 = vrot.lane.b32.xlu0 %v21, 32
  %v1104 = vpop.permute.xlu0 %1103
  %1105 = vrot.lane.b32.xlu0 %v22, 32
  %v1106 = vpop.permute.xlu0 %1105
  %1107 = vrot.lane.b32.xlu0 %v23, 32
  %v1108 = vpop.permute.xlu0 %1107
  %1109 = vrot.lane.b32.xlu0 %v24, 32
  %v1110 = vpop.permute.xlu0 %1109
  %1111 = vrot.lane.b32.xlu0 %v25, 32
  %v1112 = vpop.permute.xlu0 %1111
  %1113 = vrot.lane.b32.xlu0 %v26, 32
  %v1114 = vpop.permute.xlu0 %1113
  %1115 = vrot.lane.b32.xlu0 %v27, 32
  %v1116 = vpop.permute.xlu0 %1115
  %1117 = vrot.lane.b32.xlu0 %v28, 32
  %v1118 = vpop.permute.xlu0 %1117
  %1119 = vrot.lane.b32.xlu0 %v29, 32
  %v1120 = vpop.permute.xlu0 %1119
  %1121 = vrot.lane.b32.xlu0 %v30, 32
  %v1122 = vpop.permute.xlu0 %1121
  %1123 = vrot.lane.b32.xlu0 %v31, 32
  %v1124 = vpop.permute.xlu0 %1123
  %1125 = vrot.lane.b32.xlu0 %v32, 32
  %v1126 = vpop.permute.xlu0 %1125
  %v1127 = vsel %vm62, %v1104, %v1106
  %v1128 = vsel %vm62, %v1106, %v1108
  %v1129 = vsel %vm62, %v1110, %v1112
  %v1130 = vsel %vm62, %v1112, %v1114
  %v1131 = vsel %vm62, %v1116, %v1118
  %v1132 = vsel %vm62, %v1118, %v1120
  %v1133 = vsel %vm62, %v1122, %v1124
  %v1134 = vsel %vm62, %v1124, %v1126
  %v1144 = vsel %vm62, %v1071, 0
  %v1147 = vsel %vm62, %v1072, 0
  %1149 = vmatprep.subr.mxu0 %v1128
  %1150 = vmatpush1.msra.mxu0 %v1127
  %1151 = vmatprep.subr.mxu0 %v1130
  %1152 = vmatpush1.msra.mxu0 %v1129
  %1153 = vmatprep.subr.mxu0 %v1132
  %1154 = vmatpush1.msra.mxu0 %v1131
  %1155 = vmatprep.subr.mxu0 %v1134
  %1156 = vmatpush1.msra.mxu0 %v1133
  %1157 = vmatprep.subr.mxu0 0.0
  %1158 = vmatpush1.msra.mxu0 0.0
  %1159 = vmatprep.subr.mxu0 0.0
  %1160 = vmatpush1.msra.mxu0 0.0
  %1161 = vmatprep.subr.mxu0 0.0
  %1162 = vmatpush1.msra.mxu0 0.0
  %1163 = vmatprep.subr.mxu0 0.0
  %1164 = vmatpush1.msra.mxu0 0.0
  %1165 = vmatprep.subr.mxu0 0.0
  %1166 = vmatpush1.msra.mxu0 0.0
  %1167 = vmatprep.subr.mxu0 0.0
  %1168 = vmatpush1.msra.mxu0 0.0
  %1169 = vmatprep.subr.mxu0 0.0
  %1170 = vmatpush1.msra.mxu0 0.0
  %1171 = vmatprep.subr.mxu0 0.0
  %1172 = vmatpush1.msra.mxu0 0.0
  %1173 = vmatprep.subr.mxu0 0.0
  %1174 = vmatpush1.msra.mxu0 0.0
  %1175 = vmatprep.subr.mxu0 0.0
  %1176 = vmatpush1.msra.mxu0 0.0
  %1177 = vmatprep.subr.mxu0 0.0
  %1178 = vmatpush1.msra.mxu0 0.0
  %1179 = vmatprep.subr.mxu0 0.0
  %1180 = vmatpush1.msra.mxu0 0.0
  %1181 = vmatprep.subr.mxu0 0.0
  %1182 = vmatpush1.msra.mxu0 0.0
  %1183 = vmatprep.subr.mxu0 0.0
  %1184 = vmatpush1.msra.mxu0 0.0
  %1185 = vmatprep.subr.mxu0 0.0
  %1186 = vmatpush1.msra.mxu0 0.0
  %1187 = vmatprep.subr.mxu0 0.0
  %1188 = vmatpush1.msra.mxu0 0.0
  %1189 = vmatprep.subr.mxu0 0.0
  %1190 = vmatpush1.msra.mxu0 0.0
  %1191 = vmatprep.subr.mxu0 0.0
  %1192 = vmatpush1.msra.mxu0 0.0
  %1193 = vmatprep.subr.mxu0 0.0
  %1194 = vmatpush1.msra.mxu0 0.0
  %1195 = vmatprep.subr.mxu0 0.0
  %1196 = vmatpush1.msra.mxu0 0.0
  %1197 = vmatprep.subr.mxu0 0.0
  %1198 = vmatpush1.msra.mxu0 0.0
  %1199 = vmatprep.subr.mxu0 0.0
  %1200 = vmatpush1.msra.mxu0 0.0
  %1201 = vmatprep.subr.mxu0 0.0
  %1202 = vmatpush1.msra.mxu0 0.0
  %1203 = vmatprep.subr.mxu0 0.0
  %1204 = vmatpush1.msra.mxu0 0.0
  %1205 = vmatprep.subr.mxu0 0.0
  %1206 = vmatpush1.msra.mxu0 0.0
  %1207 = vmatprep.subr.mxu0 0.0
  %1208 = vmatpush1.msra.mxu0 0.0
  %1209 = vmatprep.subr.mxu0 0.0
  %1210 = vmatpush1.msra.mxu0 0.0
  %1211 = vmatprep.subr.mxu0 0.0
  %1212 = vmatpush1.msra.mxu0 0.0
  %1213 = vmatprep.mubr.f32.mxu0 0.0
  %1214 = vmatmul.mubr.f32.gmra.mrb[0].mxu0 %v1144
  %v1215 = vpop.f32.mrb[0].mxu0
  %v1216 = vadd.f32 %v1086, %v1215
  %v1217 = vpop.f32.mrb[0].mxu0
  %v1218 = vadd.f32 %v1090, %v1217
  %1219 = vmatprep.mubr.f32.mxu0 0.0
  %1220 = vmatmul.mubr.f32.gmra.mrb[0].mxu0 %v1147
  %v1221 = vpop.f32.mrb[0].mxu0
  %v1222 = vadd.f32 %v1086, %v1221
  %v1223 = vpop.f32.mrb[0].mxu0
  %v1224 = vadd.f32 %v1090, %v1223
  %1225 = vdwg.mxu0
  %v1226 = vtanh.pop %v1216
  %v1227 = vtanh.pop %v1218
  %v1228 = vtanh.pop %v1222
  %v1229 = vtanh.pop %v1224
  %v1230 = vld [vmem:[%s3] sm:$0xff]
  %v1231 = vld [vmem:[%s3 + $0x8] sm:$0xff]
  %v1232 = vld [vmem:[%s3 + $0x10] sm:$0xff]
  %v1233 = vld [vmem:[%s3 + $0x18] sm:$0xff]
  %v1234 = vld [vmem:[%s3 + $0x20] sm:$0xff]
  %v1235 = vld [vmem:[%s3 + $0x28] sm:$0xff]
  %v1236 = vld [vmem:[%s3 + $0x30] sm:$0xff]
  %v1237 = vld [vmem:[%s3 + $0x38] sm:$0xff]
  %v1238 = vld [vmem:[%s3 + $0x40] sm:$0xff]
  %v1239 = vld [vmem:[%s3 + $0x48] sm:$0xff]
  %v1240 = vld [vmem:[%s3 + $0x50] sm:$0xff]
  %v1241 = vld [vmem:[%s3 + $0x58] sm:$0xff]
  %v1242 = vld [vmem:[%s3 + $0x60] sm:$0xff]
  %v1243 = vld [vmem:[%s3 + $0x68] sm:$0xff]
  %v1244 = vld [vmem:[%s3 + $0x70] sm:$0xff]
  %v1245 = vld [vmem:[%s3 + $0x78] sm:$0xff]
  %v1246 = vld [vmem:[%s3 + $0x80] sm:$0xff]
  %v1247 = vld [vmem:[%s3 + $0x88] sm:$0xff]
  %v1248 = vld [vmem:[%s3 + $0x90] sm:$0xff]
  %v1249 = vld [vmem:[%s3 + $0x98] sm:$0xff]
  %v1250 = vld [vmem:[%s3 + $0xa0] sm:$0xff]
  %v1251 = vld [vmem:[%s3 + $0xa8] sm:$0xff]
  %v1252 = vld [vmem:[%s3 + $0xb0] sm:$0xff]
  %v1253 = vld [vmem:[%s3 + $0xb8] sm:$0xff]
  %v1254 = vlaneseq
  %v1255 = vshrl.u32 %v1254, 7
  %v1256 = vsub.s32 3, %v1255
  %v1257 = vrot.slane %v20, %v1256
  %vm1258 = vcmask 523264
  %v1260 = vsel %vm1258, %v1227, 0
  %v1263 = vsel %vm1258, %v1229, 0
  %1265 = vmatprep.subr.mxu0 0.0
  %1266 = vmatpush1.msra.mxu0 %v1230
  %1267 = vmatprep.subr.mxu0 0.0
  %1268 = vmatpush1.msra.mxu0 %v1231
  %1269 = vmatprep.subr.mxu0 0.0
  %1270 = vmatpush1.msra.mxu0 %v1232
  %1271 = vmatprep.subr.mxu0 0.0
  %1272 = vmatpush1.msra.mxu0 %v1233
  %1273 = vmatprep.subr.mxu0 0.0
  %1274 = vmatpush1.msra.mxu0 %v1234
  %1275 = vmatprep.subr.mxu0 0.0
  %1276 = vmatpush1.msra.mxu0 %v1235
  %1277 = vmatprep.subr.mxu0 0.0
  %1278 = vmatpush1.msra.mxu0 %v1236
  %1279 = vmatprep.subr.mxu0 0.0
  %1280 = vmatpush1.msra.mxu0 %v1237
  %1281 = vmatprep.subr.mxu0 0.0
  %1282 = vmatpush1.msra.mxu0 %v1238
  %1283 = vmatprep.subr.mxu0 0.0
  %1284 = vmatpush1.msra.mxu0 %v1239
  %1285 = vmatprep.subr.mxu0 0.0
  %1286 = vmatpush1.msra.mxu0 %v1240
  %1287 = vmatprep.subr.mxu0 0.0
  %1288 = vmatpush1.msra.mxu0 %v1241
  %1289 = vmatprep.subr.mxu0 0.0
  %1290 = vmatpush1.msra.mxu0 %v1242
  %1291 = vmatprep.subr.mxu0 0.0
  %1292 = vmatpush1.msra.mxu0 %v1243
  %1293 = vmatprep.subr.mxu0 0.0
  %1294 = vmatpush1.msra.mxu0 %v1244
  %1295 = vmatprep.subr.mxu0 0.0
  %1296 = vmatpush1.msra.mxu0 %v1245
  %1297 = vmatprep.subr.mxu0 0.0
  %1298 = vmatpush1.msra.mxu0 %v1246
  %1299 = vmatprep.subr.mxu0 0.0
  %1300 = vmatpush1.msra.mxu0 %v1247
  %1301 = vmatprep.subr.mxu0 0.0
  %1302 = vmatpush1.msra.mxu0 %v1248
  %1303 = vmatprep.subr.mxu0 0.0
  %1304 = vmatpush1.msra.mxu0 %v1249
  %1305 = vmatprep.subr.mxu0 0.0
  %1306 = vmatpush1.msra.mxu0 %v1250
  %1307 = vmatprep.subr.mxu0 0.0
  %1308 = vmatpush1.msra.mxu0 %v1251
  %1309 = vmatprep.subr.mxu0 0.0
  %1310 = vmatpush1.msra.mxu0 %v1252
  %1311 = vmatprep.subr.mxu0 0.0
  %1312 = vmatpush1.msra.mxu0 %v1253
  %1313 = vmatprep.subr.mxu0 0.0
  %1314 = vmatpush1.msra.mxu0 0.0
  %1315 = vmatprep.subr.mxu0 0.0
  %1316 = vmatpush1.msra.mxu0 0.0
  %1317 = vmatprep.subr.mxu0 0.0
  %1318 = vmatpush1.msra.mxu0 0.0
  %1319 = vmatprep.subr.mxu0 0.0
  %1320 = vmatpush1.msra.mxu0 0.0
  %1321 = vmatprep.subr.mxu0 0.0
  %1322 = vmatpush1.msra.mxu0 0.0
  %1323 = vmatprep.subr.mxu0 0.0
  %1324 = vmatpush1.msra.mxu0 0.0
  %1325 = vmatprep.subr.mxu0 0.0
  %1326 = vmatpush1.msra.mxu0 0.0
  %1327 = vmatprep.subr.mxu0 0.0
  %1328 = vmatpush1.msra.mxu0 0.0
  %1329 = vmatprep.mubr.f32.mxu0 %v1260
  %1330 = vmatmul.mubr.f32.gmra.mrb[0].mxu0 %v1226
  %v1331 = vpop.f32.mrb[0].mxu0
  %v1332 = vadd.f32 %v1257, %v1331
  %v1333 = vpop.f32.mrb[0].mxu0
  %1334 = vmatprep.mubr.f32.mxu0 %v1263
  %1335 = vmatmul.mubr.f32.gmra.mrb[0].mxu0 %v1228
  %v1336 = vpop.f32.mrb[0].mxu0
  %v1337 = vadd.f32 %v1257, %v1336
  %v1338 = vpop.f32.mrb[0].mxu0
  %1339 = vdwg.mxu0
  %vm1340 = vcmask 48128
  %v1341 = vsel %vm1340, %v1332, -inf
  %v1342 = vsel %vm1340, %v1337, -inf
  %v1343 = vmax.f32 %v1341, %v1342
  %v1344 = vrot.slane %v1343, 4
  %v1345 = vmax.f32 %v1343, %v1344
  %v1346 = vrot.slane %v1345, 2
  %v1347 = vmax.f32 %v1345, %v1346
  %v1348 = vrot.slane %v1347, 1
  %v1349 = vmax.f32 %v1347, %v1348
  %v1350 = vsub.f32 %v1332, %v1349
  %v1351 = vsub.f32 %v1337, %v1349
  %v1352 = vmul.f32 %v1350, 1.442695
  %v1353 = vpow.pop %v1352
  %v1354 = vmul.f32 %v1351, 1.442695
  %v1355 = vpow.pop %v1354
  %v1356 = vlaneseq
  %v1357 = vshrl.u32 %v1356, 7
  %v1358 = vadd.s32 %v1357, 8
  %vm1359 = vcmp.eq.s32.totalorder %v1053, %v1357
  %v1360 = vsel %vm1359, 1.0, 0.0
  %v1361 = vadd.f32 %v1360, 0.0
  %vm1362 = vcmp.eq.s32.totalorder %v1357, %v1053
  %vm1363 = vcmp.eq.s32.totalorder %v1358, %v1053
  %v1364 = vsel %vm1362, 1.0, 0.0
  %v1365 = vsel %vm1363, 1.0, 0.0
  %v1366 = vadd.f32 %v1364, 0.0
  %v1367 = vadd.f32 %v1365, 0.0
  %v1368 = vadd.s32 %v1357, 2
  %vm1369 = vcmp.eq.s32.totalorder %v1053, %v1368
  %v1370 = vsel %vm1369, 1.0, 0.0
  %v1371 = vadd.f32 %v1361, %v1370
  %v1372 = vadd.s32 %v1053, 2
  %vm1373 = vcmp.eq.s32.totalorder %v1357, %v1372
  %vm1374 = vcmp.eq.s32.totalorder %v1358, %v1372
  %v1375 = vsel %vm1373, 1.0, 0.0
  %v1376 = vsel %vm1374, 1.0, 0.0
  %v1377 = vadd.f32 %v1366, %v1375
  %v1378 = vadd.f32 %v1367, %v1376
  %v1379 = vadd.s32 %v1357, 4
  %vm1380 = vcmp.eq.s32.totalorder %v1053, %v1379
  %v1381 = vsel %vm1380, 1.0, 0.0
  %v1382 = vadd.f32 %v1371, %v1381
  %v1383 = vadd.s32 %v1053, 4
  %vm1384 = vcmp.eq.s32.totalorder %v1357, %v1383
  %vm1385 = vcmp.eq.s32.totalorder %v1358, %v1383
  %v1386 = vsel %vm1384, 1.0, 0.0
  %v1387 = vsel %vm1385, 1.0, 0.0
  %v1388 = vadd.f32 %v1377, %v1386
  %v1389 = vadd.f32 %v1378, %v1387
  %v1390 = vadd.s32 %v1357, 6
  %vm1391 = vcmp.eq.s32.totalorder %v1053, %v1390
  %v1392 = vsel %vm1391, 1.0, 0.0
  %v1393 = vadd.f32 %v1382, %v1392
  %v1394 = vadd.s32 %v1053, 6
  %vm1395 = vcmp.eq.s32.totalorder %v1357, %v1394
  %vm1396 = vcmp.eq.s32.totalorder %v1358, %v1394
  %v1397 = vsel %vm1395, 1.0, 0.0
  %v1398 = vsel %vm1396, 1.0, 0.0
  %v1399 = vadd.f32 %v1388, %v1397
  %v1400 = vadd.f32 %v1389, %v1398
  %vm1401 = vcmp.eq.s32.totalorder %v1053, %v1358
  %v1402 = vsel %vm1401, 1.0, 0.0
  %v1403 = vadd.f32 %v1393, %v1402
  %v1404 = vadd.s32 %v1053, 8
  %vm1405 = vcmp.eq.s32.totalorder %v1357, %v1404
  %vm1406 = vcmp.eq.s32.totalorder %v1358, %v1404
  %v1407 = vsel %vm1405, 1.0, 0.0
  %v1408 = vsel %vm1406, 1.0, 0.0
  %v1409 = vadd.f32 %v1399, %v1407
  %v1410 = vadd.f32 %v1400, %v1408
  %v1411 = vadd.s32 %v1357, 10
  %vm1412 = vcmp.eq.s32.totalorder %v1053, %v1411
  %v1413 = vsel %vm1412, 1.0, 0.0
  %v1414 = vadd.f32 %v1403, %v1413
  %v1415 = vadd.s32 %v1053, 10
  %vm1416 = vcmp.eq.s32.totalorder %v1357, %v1415
  %vm1417 = vcmp.eq.s32.totalorder %v1358, %v1415
  %v1418 = vsel %vm1416, 1.0, 0.0
  %v1419 = vsel %vm1417, 1.0, 0.0
  %v1420 = vadd.f32 %v1409, %v1418
  %v1421 = vadd.f32 %v1410, %v1419
  %v1422 = vadd.s32 %v1357, 12
  %vm1423 = vcmp.eq.s32.totalorder %v1053, %v1422
  %v1424 = vsel %vm1423, 1.0, 0.0
  %v1425 = vadd.f32 %v1414, %v1424
  %v1426 = vadd.s32 %v1053, 12
  %vm1427 = vcmp.eq.s32.totalorder %v1357, %v1426
  %vm1428 = vcmp.eq.s32.totalorder %v1358, %v1426
  %v1429 = vsel %vm1427, 1.0, 0.0
  %v1430 = vsel %vm1428, 1.0, 0.0
  %v1431 = vadd.f32 %v1420, %v1429
  %v1432 = vadd.f32 %v1421, %v1430
  %v1433 = vadd.s32 %v1357, 14
  %vm1434 = vcmp.eq.s32.totalorder %v1053, %v1433
  %v1435 = vsel %vm1434, 1.0, 0.0
  %v1436 = vadd.f32 %v1425, %v1435
  %v1437 = vadd.s32 %v1053, 14
  %vm1438 = vcmp.eq.s32.totalorder %v1357, %v1437
  %vm1439 = vcmp.eq.s32.totalorder %v1358, %v1437
  %v1440 = vsel %vm1438, 1.0, 0.0
  %v1441 = vsel %vm1439, 1.0, 0.0
  %v1442 = vadd.f32 %v1431, %v1440
  %v1443 = vadd.f32 %v1432, %v1441
  %vm1444 = vcmask 130048
  %v1446 = vsel %vm1444, %v1436, 0
  %1448 = vmatprep.subr.mxu0 0.0
  %1449 = vmatpush1.msra.mxu0 %v1353
  %1450 = vmatprep.subr.mxu0 0.0
  %1451 = vmatpush1.msra.mxu0 %v1355
  %1452 = vmatprep.subr.mxu0 0.0
  %1453 = vmatpush1.msra.mxu0 0.0
  %1454 = vmatprep.subr.mxu0 0.0
  %1455 = vmatpush1.msra.mxu0 0.0
  %1456 = vmatprep.subr.mxu0 0.0
  %1457 = vmatpush1.msra.mxu0 0.0
  %1458 = vmatprep.subr.mxu0 0.0
  %1459 = vmatpush1.msra.mxu0 0.0
  %1460 = vmatprep.subr.mxu0 0.0
  %1461 = vmatpush1.msra.mxu0 0.0
  %1462 = vmatprep.subr.mxu0 0.0
  %1463 = vmatpush1.msra.mxu0 0.0
  %1464 = vmatprep.subr.mxu0 0.0
  %1465 = vmatpush1.msra.mxu0 0.0
  %1466 = vmatprep.subr.mxu0 0.0
  %1467 = vmatpush1.msra.mxu0 0.0
  %1468 = vmatprep.subr.mxu0 0.0
  %1469 = vmatpush1.msra.mxu0 0.0
  %1470 = vmatprep.subr.mxu0 0.0
  %1471 = vmatpush1.msra.mxu0 0.0
  %1472 = vmatprep.subr.mxu0 0.0
  %1473 = vmatpush1.msra.mxu0 0.0
  %1474 = vmatprep.subr.mxu0 0.0
  %1475 = vmatpush1.msra.mxu0 0.0
  %1476 = vmatprep.subr.mxu0 0.0
  %1477 = vmatpush1.msra.mxu0 0.0
  %1478 = vmatprep.subr.mxu0 0.0
  %1479 = vmatpush1.msra.mxu0 0.0
  %1480 = vmatprep.subr.mxu0 0.0
  %1481 = vmatpush1.msra.mxu0 0.0
  %1482 = vmatprep.subr.mxu0 0.0
  %1483 = vmatpush1.msra.mxu0 0.0
  %1484 = vmatprep.subr.mxu0 0.0
  %1485 = vmatpush1.msra.mxu0 0.0
  %1486 = vmatprep.subr.mxu0 0.0
  %1487 = vmatpush1.msra.mxu0 0.0
  %1488 = vmatprep.subr.mxu0 0.0
  %1489 = vmatpush1.msra.mxu0 0.0
  %1490 = vmatprep.subr.mxu0 0.0
  %1491 = vmatpush1.msra.mxu0 0.0
  %1492 = vmatprep.subr.mxu0 0.0
  %1493 = vmatpush1.msra.mxu0 0.0
  %1494 = vmatprep.subr.mxu0 0.0
  %1495 = vmatpush1.msra.mxu0 0.0
  %1496 = vmatprep.subr.mxu0 0.0
  %1497 = vmatpush1.msra.mxu0 0.0
  %1498 = vmatprep.subr.mxu0 0.0
  %1499 = vmatpush1.msra.mxu0 0.0
  %1500 = vmatprep.subr.mxu0 0.0
  %1501 = vmatpush1.msra.mxu0 0.0
  %1502 = vmatprep.subr.mxu0 0.0
  %1503 = vmatpush1.msra.mxu0 0.0
  %1504 = vmatprep.subr.mxu0 0.0
  %1505 = vmatpush1.msra.mxu0 0.0
  %1506 = vmatprep.subr.mxu0 0.0
  %1507 = vmatpush1.msra.mxu0 0.0
  %1508 = vmatprep.subr.mxu0 0.0
  %1509 = vmatpush1.msra.mxu0 0.0
  %1510 = vmatprep.subr.mxu0 0.0
  %1511 = vmatpush1.msra.mxu0 0.0
  %1512 = vmatprep.mubr.f32.mxu0 0.0
  %1513 = vmatmul.mubr.f32.gmra.mrb[0].mxu0 %v1446
  %v1514 = vpop.f32.mrb[0].mxu0
  %v1515 = vadd.f32 0.0, %v1514
  %v1516 = vpop.f32.mrb[0].mxu0
  %1517 = vdwg.mxu0
  %vm1518 = vcmask 15360
  %v1520 = vsel %vm1518, %v1442, 0
  %v1523 = vsel %vm1518, %v1443, 0
  %v1526 = vsel %vm1026, %v1515, 0
  %1528 = vmatprep.subr.mxu0 0.0
  %1529 = vmatpush1.msra.mxu0 %v1526
  %1530 = vmatprep.subr.mxu0 0.0
  %1531 = vmatpush1.msra.mxu0 0.0
  %1532 = vmatprep.subr.mxu0 0.0
  %1533 = vmatpush1.msra.mxu0 0.0
  %1534 = vmatprep.subr.mxu0 0.0
  %1535 = vmatpush1.msra.mxu0 0.0
  %1536 = vmatprep.subr.mxu0 0.0
  %1537 = vmatpush1.msra.mxu0 0.0
  %1538 = vmatprep.subr.mxu0 0.0
  %1539 = vmatpush1.msra.mxu0 0.0
  %1540 = vmatprep.subr.mxu0 0.0
  %1541 = vmatpush1.msra.mxu0 0.0
  %1542 = vmatprep.subr.mxu0 0.0
  %1543 = vmatpush1.msra.mxu0 0.0
  %1544 = vmatprep.subr.mxu0 0.0
  %1545 = vmatpush1.msra.mxu0 0.0
  %1546 = vmatprep.subr.mxu0 0.0
  %1547 = vmatpush1.msra.mxu0 0.0
  %1548 = vmatprep.subr.mxu0 0.0
  %1549 = vmatpush1.msra.mxu0 0.0
  %1550 = vmatprep.subr.mxu0 0.0
  %1551 = vmatpush1.msra.mxu0 0.0
  %1552 = vmatprep.subr.mxu0 0.0
  %1553 = vmatpush1.msra.mxu0 0.0
  %1554 = vmatprep.subr.mxu0 0.0
  %1555 = vmatpush1.msra.mxu0 0.0
  %1556 = vmatprep.subr.mxu0 0.0
  %1557 = vmatpush1.msra.mxu0 0.0
  %1558 = vmatprep.subr.mxu0 0.0
  %1559 = vmatpush1.msra.mxu0 0.0
  %1560 = vmatprep.subr.mxu0 0.0
  %1561 = vmatpush1.msra.mxu0 0.0
  %1562 = vmatprep.subr.mxu0 0.0
  %1563 = vmatpush1.msra.mxu0 0.0
  %1564 = vmatprep.subr.mxu0 0.0
  %1565 = vmatpush1.msra.mxu0 0.0
  %1566 = vmatprep.subr.mxu0 0.0
  %1567 = vmatpush1.msra.mxu0 0.0
  %1568 = vmatprep.subr.mxu0 0.0
  %1569 = vmatpush1.msra.mxu0 0.0
  %1570 = vmatprep.subr.mxu0 0.0
  %1571 = vmatpush1.msra.mxu0 0.0
  %1572 = vmatprep.subr.mxu0 0.0
  %1573 = vmatpush1.msra.mxu0 0.0
  %1574 = vmatprep.subr.mxu0 0.0
  %1575 = vmatpush1.msra.mxu0 0.0
  %1576 = vmatprep.subr.mxu0 0.0
  %1577 = vmatpush1.msra.mxu0 0.0
  %1578 = vmatprep.subr.mxu0 0.0
  %1579 = vmatpush1.msra.mxu0 0.0
  %1580 = vmatprep.subr.mxu0 0.0
  %1581 = vmatpush1.msra.mxu0 0.0
  %1582 = vmatprep.subr.mxu0 0.0
  %1583 = vmatpush1.msra.mxu0 0.0
  %1584 = vmatprep.subr.mxu0 0.0
  %1585 = vmatpush1.msra.mxu0 0.0
  %1586 = vmatprep.subr.mxu0 0.0
  %1587 = vmatpush1.msra.mxu0 0.0
  %1588 = vmatprep.subr.mxu0 0.0
  %1589 = vmatpush1.msra.mxu0 0.0
  %1590 = vmatprep.subr.mxu0 0.0
  %1591 = vmatpush1.msra.mxu0 0.0
  %1592 = vmatprep.mubr.f32.mxu0 0.0
  %1593 = vmatmul.mubr.f32.gmra.mrb[0].mxu0 %v1520
  %v1594 = vpop.f32.mrb[0].mxu0
  %v1595 = vadd.f32 0.0, %v1594
  %v1596 = vpop.f32.mrb[0].mxu0
  %1597 = vmatprep.mubr.f32.mxu0 0.0
  %1598 = vmatmul.mubr.f32.gmra.mrb[0].mxu0 %v1523
  %v1599 = vpop.f32.mrb[0].mxu0
  %v1600 = vadd.f32 0.0, %v1599
  %v1601 = vpop.f32.mrb[0].mxu0
  %1602 = vdwg.mxu0
  %v1603 = vrcp.pop %v1595
  %v1604 = vrcp.pop %v1600
  %v1605 = vmul.f32 %v1353, %v1603
  %v1606 = vmul.f32 %v1355, %v1604
  %v1607 = vsel %vm1340, %v1605, 0.0
  %1608 = vadd.xlane.f32.xlu0 %v1607
  %v1609 = vpop.xlane.xlu0 %1608
  %v1610 = vsel %vm1340, %v1606, 0.0
  %1611 = vadd.xlane.f32.xlu0 %v1610
  %v1612 = vpop.xlane.xlu0 %1611
  %v1613 = vmul.f32 %v1609, 0.16666667
  %v1614 = vmul.f32 %v1612, 0.16666667
  %v1615 = vmul.f32 %v1613, %v1071
  %v1616 = vmul.f32 %v1614, %v1072
  %1617 = vmatprep.subr.mxu0 0.0
  %1618 = vmatpush1.msra.mxu0 %v1615
  %1619 = vmatprep.subr.mxu0 0.0
  %1620 = vmatpush1.msra.mxu0 %v1616
  %1621 = vmatprep.subr.mxu0 0.0
  %1622 = vmatpush1.msra.mxu0 0.0
  %1623 = vmatprep.subr.mxu0 0.0
  %1624 = vmatpush1.msra.mxu0 0.0
  %1625 = vmatprep.subr.mxu0 0.0
  %1626 = vmatpush1.msra.mxu0 0.0
  %1627 = vmatprep.subr.mxu0 0.0
  %1628 = vmatpush1.msra.mxu0 0.0
  %1629 = vmatprep.subr.mxu0 0.0
  %1630 = vmatpush1.msra.mxu0 0.0
  %1631 = vmatprep.subr.mxu0 0.0
  %1632 = vmatpush1.msra.mxu0 0.0
  %1633 = vmatprep.subr.mxu0 0.0
  %1634 = vmatpush1.msra.mxu0 0.0
  %1635 = vmatprep.subr.mxu0 0.0
  %1636 = vmatpush1.msra.mxu0 0.0
  %1637 = vmatprep.subr.mxu0 0.0
  %1638 = vmatpush1.msra.mxu0 0.0
  %1639 = vmatprep.subr.mxu0 0.0
  %1640 = vmatpush1.msra.mxu0 0.0
  %1641 = vmatprep.subr.mxu0 0.0
  %1642 = vmatpush1.msra.mxu0 0.0
  %1643 = vmatprep.subr.mxu0 0.0
  %1644 = vmatpush1.msra.mxu0 0.0
  %1645 = vmatprep.subr.mxu0 0.0
  %1646 = vmatpush1.msra.mxu0 0.0
  %1647 = vmatprep.subr.mxu0 0.0
  %1648 = vmatpush1.msra.mxu0 0.0
  %1649 = vmatprep.subr.mxu0 0.0
  %1650 = vmatpush1.msra.mxu0 0.0
  %1651 = vmatprep.subr.mxu0 0.0
  %1652 = vmatpush1.msra.mxu0 0.0
  %1653 = vmatprep.subr.mxu0 0.0
  %1654 = vmatpush1.msra.mxu0 0.0
  %1655 = vmatprep.subr.mxu0 0.0
  %1656 = vmatpush1.msra.mxu0 0.0
  %1657 = vmatprep.subr.mxu0 0.0
  %1658 = vmatpush1.msra.mxu0 0.0
  %1659 = vmatprep.subr.mxu0 0.0
  %1660 = vmatpush1.msra.mxu0 0.0
  %1661 = vmatprep.subr.mxu0 0.0
  %1662 = vmatpush1.msra.mxu0 0.0
  %1663 = vmatprep.subr.mxu0 0.0
  %1664 = vmatpush1.msra.mxu0 0.0
  %1665 = vmatprep.subr.mxu0 0.0
  %1666 = vmatpush1.msra.mxu0 0.0
  %1667 = vmatprep.subr.mxu0 0.0
  %1668 = vmatpush1.msra.mxu0 0.0
  %1669 = vmatprep.subr.mxu0 0.0
  %1670 = vmatpush1.msra.mxu0 0.0
  %1671 = vmatprep.subr.mxu0 0.0
  %1672 = vmatpush1.msra.mxu0 0.0
  %1673 = vmatprep.subr.mxu0 0.0
  %1674 = vmatpush1.msra.mxu0 0.0
  %1675 = vmatprep.subr.mxu0 0.0
  %1676 = vmatpush1.msra.mxu0 0.0
  %1677 = vmatprep.subr.mxu0 0.0
  %1678 = vmatpush1.msra.mxu0 0.0
  %1679 = vmatprep.subr.mxu0 0.0
  %1680 = vmatpush1.msra.mxu0 0.0
  %1681 = vmatprep.mubr.f32.mxu0 0.0
  %1682 = vmatmul.mubr.f32.gmra.mrb[0].mxu0 %v1446
  %v1683 = vpop.f32.mrb[0].mxu0
  %v1684 = vadd.f32 0.0, %v1683
  %v1685 = vpop.f32.mrb[0].mxu0
  %1686 = vdwg.mxu0
  %v1687 = vrot.slane %v1025, 4
  %1688 = vrot.lane.b32.xlu0 %v1687, 96
  %v1689 = vpop.permute.xlu0 %1688
  %v1691 = vsel %vm1026, %v1684, %v1689
  %vm1692 = vcmask 257024
  %1693 = vst.msk [vmem:[%s5] sm:$0xf] %vm1692, %v1691
  // Predicated region
  $region22: #{sent_att_net_fishqa.1} parent=0 // pred_check
    _
  $region23: #{sent_att_net_fishqa.1} parent=0 // pred_check_branch
    %1695 = sbr.rel (0) target = $region25
  $region24: #{sent_att_net_fishqa.1} parent=0 // pred_region
    _
  $region25: #{sent_att_net_fishqa.1} parent=0 // pred_fallthru
    _
  // Predicated region
  $region26: #{sent_att_net_fishqa.1} parent=0 // pred_check
    _
  $region27: #{sent_att_net_fishqa.1} parent=0 // pred_check_branch
    %1697 = sbr.rel (0) target = $region29
  $region28: #{sent_att_net_fishqa.1} parent=0 // pred_region
    _
  $region29: #{sent_att_net_fishqa.1} parent=0 // pred_fallthru
    _

</llo_original>
